<compile_context>
chip_gen: v7x
topology: tpu7x:2x2x1
jax: 0.10.0
libtpu: 0.0.40
codegen_flags: <defaults>
</compile_context>

<pallas_src>
from functools import partial

import jax
import jax.numpy as jnp
from jax.experimental import pallas as pl
from jax.experimental.pallas import tpu as pltpu

N_OSC = 4  # each Guido has 4 oscillators (default n_oscillators=4)


def _multi_guido_kernel(fs, state_ref, freq_ref, c_ref, a_ref, out_ref):
    """One block of agents, agents on the lane axis.

    state_ref : (2,  BG)  sensory input rows (only 2 of the 4 oscillators driven)
    freq_ref  : (4,  BG)  frequency_array rows
    c_ref     : (16, BG)  in-phase coupling, row 4*j + i = C[i, j]
    a_ref     : (16, BG)  anti-phase coupling (C / k), same row layout
    out_ref   : (4,  BG)  rows 0..2 = softmax probs, row 3 = output angle
    """
    dt = jnp.float32(1.0 / fs)
    state = state_ref[...]                    # (2, BG)
    freq = freq_ref[...]                      # (4, BG)
    c_all = c_ref[...]                        # (16, BG) -- loaded once, reused by all RK stages
    a_all = a_ref[...]                        # (16, BG)

    # Driving term is invariant across the 4 RK stages (the reference reuses x):
    #   drive_i = 2*pi*f_i + x_i,  x = [in0, in1, 0, 0]   (built in-kernel, no wrapper scatter)
    two_pi_f = (2.0 * jnp.pi) * freq
    x = jnp.concatenate([state, jnp.zeros_like(state)], axis=0)   # (4, BG)
    drive = two_pi_f + x

    def deriv(p):
        # MutualInfluenceLayer (in-phase + anti-phase) via sin/cos sum identities:
        #   sin(phi_i - phi_j)   = s_i*c_j - c_i*s_j
        #   cos(phi_i - phi_j)   = c_i*c_j + s_i*s_j
        #   sin(2(phi_i - phi_j))= 2*sin(d)*cos(d)
        # -> 2 transcendental evals per stage instead of 2*N*N.
        s = jnp.sin(p)                         # (4, BG)
        c = jnp.cos(p)                         # (4, BG)
        coup = jnp.zeros_like(p)
        for j in range(N_OSC):                 # tiny, fully unrolled
            sj = s[j:j + 1, :]                 # (1, BG) -> broadcasts over sublanes
            cj = c[j:j + 1, :]
            sin_d = s * cj - c * sj            # sin(phi_i - phi_j) for all i
            cos_d = c * cj + s * sj
            sin_2d = 2.0 * sin_d * cos_d       # sin(2*(phi_i - phi_j))
            coup = coup + c_all[4 * j:4 * j + 4, :] * sin_d \
                        + a_all[4 * j:4 * j + 4, :] * sin_2d
        return drive - coup

    # FullStepLayer: one RK4 step from phases0 = 0 (p0 built in-kernel, no input DMA)
    p0 = jnp.zeros_like(freq)
    k1 = deriv(p0) * dt
    k2 = deriv(p0 + 0.5 * k1) * dt
    k3 = deriv(p0 + 0.5 * k2) * dt
    k4 = deriv(p0 + k3) * dt
    p_new = p0 + (k1 + 2.0 * k2 + 2.0 * k3 + k4) * (1.0 / 6.0)

    # Guido head
    angle = p_new[2:3, :] - p_new[3:4, :]      # (1, BG)
    a_c = jnp.sqrt(jnp.float32(1.0 / (1.0 * jnp.pi)))
    logit_r = a_c * (1.0 - jnp.sin(-angle))
    logit_l = a_c * (1.0 - jnp.sin(angle))
    logit_f = a_c * (1.0 - jnp.cos(jnp.pi - angle))

    # F.softmax over the 3 actions (rows), numerically stable
    m = jnp.maximum(jnp.maximum(logit_r, logit_l), logit_f)
    e_r = jnp.exp(logit_r - m)
    e_l = jnp.exp(logit_l - m)
    e_f = jnp.exp(logit_f - m)
    inv = 1.0 / (e_r + e_l + e_f)

    # Single fused, lane-dense output slab (unmasked stores, one writeback DMA).
    out_ref[...] = jnp.concatenate([e_r * inv, e_l * inv, e_f * inv, angle], axis=0)


def multiple_guidos_forward(state, freq_arr, C, A, fs):
    """state: (G, 2) per-agent sensory input.  Returns ((1, 3*G) probs, (G,) angles)."""
    G = state.shape[0]
    lanes = 128
    gp = -(-G // lanes) * lanes                # pad agents to a lane multiple
    bg = min(gp, 512)                          # agent block (lane) width per grid step
    gp = -(-gp // bg) * bg                     # make padded G a multiple of the block
    pad = gp - G

    # Transpose to agents-on-lanes layout; flatten coupling to (16, Gp) with
    # row index 4*j + i (so a fixed-j block is a contiguous 4-row slice).
    state_t = jnp.pad(state.astype(jnp.float32), ((0, pad), (0, 0))).T            # (2, gp)
    freq_t = jnp.pad(freq_arr.astype(jnp.float32), ((0, pad), (0, 0))).T           # (4, gp)
    c_t = jnp.pad(jnp.transpose(C.astype(jnp.float32), (2, 1, 0)).reshape(16, G),
                  ((0, 0), (0, pad)))                                              # (16, gp)
    a_t = jnp.pad(jnp.transpose(A.astype(jnp.float32), (2, 1, 0)).reshape(16, G),
                  ((0, 0), (0, pad)))                                              # (16, gp)

    out = pl.pallas_call(
        partial(_multi_guido_kernel, float(fs)),
        out_shape=jax.ShapeDtypeStruct((4, gp), jnp.float32),
        grid=(gp // bg,),
        in_specs=[
            pl.BlockSpec((2, bg), lambda g: (0, g)),
            pl.BlockSpec((4, bg), lambda g: (0, g)),
            pl.BlockSpec((16, bg), lambda g: (0, g)),
            pl.BlockSpec((16, bg), lambda g: (0, g)),
        ],
        out_specs=pl.BlockSpec((4, bg), lambda g: (0, g)),
        compiler_params=pltpu.CompilerParams(dimension_semantics=("parallel",)),
    )(state_t, freq_t, c_t, a_t)

    # torch.cat of per-agent (1, 3) outputs along dim=1 -> (1, 3*G); layout plumbing
    # (slice / transpose / reshape of the lane-dense slab) is done by XLA outside.
    probs = out[:3, :G].T.reshape(1, 3 * G)
    angles = out[3, :G]
    return probs, angles


def _reference_forward(state, freq_arr, C, A, fs):
    """Pure-JAX reference (direct sin(d), sin(2d)) for tolerance checking."""
    dt = jnp.float32(1.0 / fs)
    G = state.shape[0]
    x = jnp.zeros((G, N_OSC), jnp.float32).at[:, :2].set(state.astype(jnp.float32))
    two_pi_f = 2.0 * jnp.pi * freq_arr

    def deriv(p):
        d = p[:, :, None] - p[:, None, :]      # d[g, i, j] = phi_i - phi_j
        coup = jnp.sum(C * jnp.sin(d) + A * jnp.sin(2.0 * d), axis=2)
        return two_pi_f + x - coup

    p0 = jnp.zeros_like(freq_arr)
    k1 = deriv(p0) * dt
    k2 = deriv(p0 + 0.5 * k1) * dt
    k3 = deriv(p0 + 0.5 * k2) * dt
    k4 = deriv(p0 + k3) * dt
    p_new = p0 + (k1 + 2.0 * k2 + 2.0 * k3 + k4) / 6.0

    angle = p_new[:, 2] - p_new[:, 3]
    a_c = jnp.sqrt(1.0 / (1.0 * jnp.pi))
    logits = jnp.stack(
        [a_c * (1.0 - jnp.sin(-angle)),
         a_c * (1.0 - jnp.sin(angle)),
         a_c * (1.0 - jnp.cos(jnp.pi - angle))], axis=1)
    probs = jax.nn.softmax(logits, axis=1)
    return probs.reshape(1, 3 * G), angle


def init_guido_params(key, size):
    """Deterministic synthetic init matching Guido.__init__ distributions."""
    kf, kp, kk = jax.random.split(key, 3)
    freq = jax.random.uniform(kf, (size, 2), jnp.float32, 0.3, 3.0)      # uniform_(0.3, 3)
    pc = jax.random.uniform(kp, (size, 6), jnp.float32, 0.1, 5.0)        # uniform_(0.1, 5)
    k = jax.random.uniform(kk, (size, 1), jnp.float32, 1.0, 10.0)        # uniform_(1, 10)

    # frequency_array = [f_sens, f_sens, f_mot, f_mot]
    freq_arr = jnp.stack([freq[:, 0], freq[:, 0], freq[:, 1], freq[:, 1]], axis=1)

    a_sens, a_ips_l, a_ips_r, a_con_l, a_con_r, a_motor = [pc[:, i] for i in range(6)]
    z = jnp.zeros_like(a_sens)
    C = jnp.stack(
        [
            jnp.stack([z, a_sens, a_ips_l, a_con_l], axis=1),
            jnp.stack([a_sens, z, a_con_r, a_ips_r], axis=1),
            jnp.stack([a_ips_l, a_con_r, z, a_motor], axis=1),
            jnp.stack([a_con_l, a_ips_r, a_motor, z], axis=1),
        ],
        axis=1,
    )  # (size, 4, 4)
    A = C / k[:, :, None]  # anti-phase coupling = C / k
    return freq_arr, C, A


if __name__ == "__main__":
    key = jax.random.PRNGKey(0)
    size = 4          # number of guidos
    fs = 100.0        # sampling frequency (dt = 1/fs)

    pkey, skey = jax.random.split(key)
    freq_arr, C, A = init_guido_params(pkey, size)
    state = jax.random.uniform(skey, (size, 2), jnp.float32, 0.0, 1.0)

    probs, angles = multiple_guidos_forward(state, freq_arr, C, A, fs)
    probs = jax.block_until_ready(probs)
    angles = jax.block_until_ready(angles)
    assert probs.shape == (1, 3 * size)
    assert angles.shape == (size,)

    # tolerance check of the sin/cos-identity rewrite against a direct-sin reference
    probs_ref, angles_ref = _reference_forward(state, freq_arr, C, A, fs)
    assert jnp.allclose(probs, probs_ref, atol=1e-4, rtol=1e-3)
    assert jnp.allclose(angles, angles_ref, atol=1e-4, rtol=1e-3)

    print("KERNEL_OK")
</pallas_src>

<mosaic_0001>
module attributes {stable_mosaic.version = 11 : i64} {
  func.func @_multi_guido_kernel(%arg0: i32, %arg1: memref<2x128xf32, #tpu.memory_space<vmem>>, %arg2: memref<4x128xf32, #tpu.memory_space<vmem>>, %arg3: memref<16x128xf32, #tpu.memory_space<vmem>>, %arg4: memref<16x128xf32, #tpu.memory_space<vmem>>, %arg5: memref<4x128xf32, #tpu.memory_space<vmem>>) attributes {dimension_semantics = [#tpu.dimension_semantics<parallel>], iteration_bounds = array<i64: 1>, scalar_prefetch = 0 : i64, scratch_operands = 0 : i64, tpu.core_type = #tpu.core_type<tc>, window_params = [{transform_indices = @transform_0, window_bounds = array<i64: 2, 128>}, {transform_indices = @transform_1, window_bounds = array<i64: 4, 128>}, {transform_indices = @transform_2, window_bounds = array<i64: 16, 128>}, {transform_indices = @transform_3, window_bounds = array<i64: 16, 128>}, {transform_indices = @transform_4, window_bounds = array<i64: 4, 128>}]} {
    %c0 = arith.constant 0 : index
    %c0_0 = arith.constant 0 : index
    %0 = vector.load %arg1[%c0, %c0_0] : memref<2x128xf32, #tpu.memory_space<vmem>>, vector<2x128xf32>
    %c0_1 = arith.constant 0 : index
    %c0_2 = arith.constant 0 : index
    %1 = vector.load %arg2[%c0_1, %c0_2] : memref<4x128xf32, #tpu.memory_space<vmem>>, vector<4x128xf32>
    %c0_3 = arith.constant 0 : index
    %c0_4 = arith.constant 0 : index
    %2 = vector.load %arg3[%c0_3, %c0_4] : memref<16x128xf32, #tpu.memory_space<vmem>>, vector<16x128xf32>
    %c0_5 = arith.constant 0 : index
    %c0_6 = arith.constant 0 : index
    %3 = vector.load %arg4[%c0_5, %c0_6] : memref<16x128xf32, #tpu.memory_space<vmem>>, vector<16x128xf32>
    %cst = arith.constant 6.28318548 : f32
    %4 = vector.broadcast %cst : f32 to vector<4x128xf32>
    %5 = arith.mulf %4, %1 : vector<4x128xf32>
    %cst_7 = arith.constant 0.000000e+00 : f32
    %6 = vector.broadcast %cst_7 : f32 to vector<2x128xf32>
    %7 = tpu.concatenate %0, %6 in 0 : vector<2x128xf32>, vector<2x128xf32> -> vector<4x128xf32>
    %8 = arith.addf %5, %7 : vector<4x128xf32>
    %cst_8 = arith.constant 0.000000e+00 : f32
    %9 = vector.broadcast %cst_8 : f32 to vector<4x128xf32>
    %10 = math.sin %9 : vector<4x128xf32>
    %11 = math.cos %9 : vector<4x128xf32>
    %cst_9 = arith.constant 0.000000e+00 : f32
    %12 = vector.broadcast %cst_9 : f32 to vector<4x128xf32>
    %13 = vector.extract_strided_slice %10 {offsets = [0, 0], sizes = [1, 128], strides = [1, 1]} : vector<4x128xf32> to vector<1x128xf32>
    %14 = vector.extract_strided_slice %11 {offsets = [0, 0], sizes = [1, 128], strides = [1, 1]} : vector<4x128xf32> to vector<1x128xf32>
    %15 = vector.broadcast %14 : vector<1x128xf32> to vector<4x128xf32>
    %16 = arith.mulf %10, %15 : vector<4x128xf32>
    %17 = vector.broadcast %13 : vector<1x128xf32> to vector<4x128xf32>
    %18 = arith.mulf %11, %17 : vector<4x128xf32>
    %19 = arith.subf %16, %18 : vector<4x128xf32>
    %20 = vector.broadcast %14 : vector<1x128xf32> to vector<4x128xf32>
    %21 = arith.mulf %11, %20 : vector<4x128xf32>
    %22 = vector.broadcast %13 : vector<1x128xf32> to vector<4x128xf32>
    %23 = arith.mulf %10, %22 : vector<4x128xf32>
    %24 = arith.addf %21, %23 : vector<4x128xf32>
    %cst_10 = arith.constant 2.000000e+00 : f32
    %25 = vector.broadcast %cst_10 : f32 to vector<4x128xf32>
    %26 = arith.mulf %25, %19 : vector<4x128xf32>
    %27 = arith.mulf %26, %24 : vector<4x128xf32>
    %28 = vector.extract_strided_slice %2 {offsets = [0, 0], sizes = [4, 128], strides = [1, 1]} : vector<16x128xf32> to vector<4x128xf32>
    %29 = arith.mulf %28, %19 : vector<4x128xf32>
    %30 = arith.addf %12, %29 : vector<4x128xf32>
    %31 = vector.extract_strided_slice %3 {offsets = [0, 0], sizes = [4, 128], strides = [1, 1]} : vector<16x128xf32> to vector<4x128xf32>
    %32 = arith.mulf %31, %27 : vector<4x128xf32>
    %33 = arith.addf %30, %32 : vector<4x128xf32>
    %34 = vector.extract_strided_slice %10 {offsets = [1, 0], sizes = [1, 128], strides = [1, 1]} : vector<4x128xf32> to vector<1x128xf32>
    %35 = vector.extract_strided_slice %11 {offsets = [1, 0], sizes = [1, 128], strides = [1, 1]} : vector<4x128xf32> to vector<1x128xf32>
    %36 = vector.broadcast %35 : vector<1x128xf32> to vector<4x128xf32>
    %37 = arith.mulf %10, %36 : vector<4x128xf32>
    %38 = vector.broadcast %34 : vector<1x128xf32> to vector<4x128xf32>
    %39 = arith.mulf %11, %38 : vector<4x128xf32>
    %40 = arith.subf %37, %39 : vector<4x128xf32>
    %41 = vector.broadcast %35 : vector<1x128xf32> to vector<4x128xf32>
    %42 = arith.mulf %11, %41 : vector<4x128xf32>
    %43 = vector.broadcast %34 : vector<1x128xf32> to vector<4x128xf32>
    %44 = arith.mulf %10, %43 : vector<4x128xf32>
    %45 = arith.addf %42, %44 : vector<4x128xf32>
    %cst_11 = arith.constant 2.000000e+00 : f32
    %46 = vector.broadcast %cst_11 : f32 to vector<4x128xf32>
    %47 = arith.mulf %46, %40 : vector<4x128xf32>
    %48 = arith.mulf %47, %45 : vector<4x128xf32>
    %49 = vector.extract_strided_slice %2 {offsets = [4, 0], sizes = [4, 128], strides = [1, 1]} : vector<16x128xf32> to vector<4x128xf32>
    %50 = arith.mulf %49, %40 : vector<4x128xf32>
    %51 = arith.addf %33, %50 : vector<4x128xf32>
    %52 = vector.extract_strided_slice %3 {offsets = [4, 0], sizes = [4, 128], strides = [1, 1]} : vector<16x128xf32> to vector<4x128xf32>
    %53 = arith.mulf %52, %48 : vector<4x128xf32>
    %54 = arith.addf %51, %53 : vector<4x128xf32>
    %55 = vector.extract_strided_slice %10 {offsets = [2, 0], sizes = [1, 128], strides = [1, 1]} : vector<4x128xf32> to vector<1x128xf32>
    %56 = vector.extract_strided_slice %11 {offsets = [2, 0], sizes = [1, 128], strides = [1, 1]} : vector<4x128xf32> to vector<1x128xf32>
    %57 = vector.broadcast %56 : vector<1x128xf32> to vector<4x128xf32>
    %58 = arith.mulf %10, %57 : vector<4x128xf32>
    %59 = vector.broadcast %55 : vector<1x128xf32> to vector<4x128xf32>
    %60 = arith.mulf %11, %59 : vector<4x128xf32>
    %61 = arith.subf %58, %60 : vector<4x128xf32>
    %62 = vector.broadcast %56 : vector<1x128xf32> to vector<4x128xf32>
    %63 = arith.mulf %11, %62 : vector<4x128xf32>
    %64 = vector.broadcast %55 : vector<1x128xf32> to vector<4x128xf32>
    %65 = arith.mulf %10, %64 : vector<4x128xf32>
    %66 = arith.addf %63, %65 : vector<4x128xf32>
    %cst_12 = arith.constant 2.000000e+00 : f32
    %67 = vector.broadcast %cst_12 : f32 to vector<4x128xf32>
    %68 = arith.mulf %67, %61 : vector<4x128xf32>
    %69 = arith.mulf %68, %66 : vector<4x128xf32>
    %70 = vector.extract_strided_slice %2 {offsets = [8, 0], sizes = [4, 128], strides = [1, 1]} : vector<16x128xf32> to vector<4x128xf32>
    %71 = arith.mulf %70, %61 : vector<4x128xf32>
    %72 = arith.addf %54, %71 : vector<4x128xf32>
    %73 = vector.extract_strided_slice %3 {offsets = [8, 0], sizes = [4, 128], strides = [1, 1]} : vector<16x128xf32> to vector<4x128xf32>
    %74 = arith.mulf %73, %69 : vector<4x128xf32>
    %75 = arith.addf %72, %74 : vector<4x128xf32>
    %76 = vector.extract_strided_slice %10 {offsets = [3, 0], sizes = [1, 128], strides = [1, 1]} : vector<4x128xf32> to vector<1x128xf32>
    %77 = vector.extract_strided_slice %11 {offsets = [3, 0], sizes = [1, 128], strides = [1, 1]} : vector<4x128xf32> to vector<1x128xf32>
    %78 = vector.broadcast %77 : vector<1x128xf32> to vector<4x128xf32>
    %79 = arith.mulf %10, %78 : vector<4x128xf32>
    %80 = vector.broadcast %76 : vector<1x128xf32> to vector<4x128xf32>
    %81 = arith.mulf %11, %80 : vector<4x128xf32>
    %82 = arith.subf %79, %81 : vector<4x128xf32>
    %83 = vector.broadcast %77 : vector<1x128xf32> to vector<4x128xf32>
    %84 = arith.mulf %11, %83 : vector<4x128xf32>
    %85 = vector.broadcast %76 : vector<1x128xf32> to vector<4x128xf32>
    %86 = arith.mulf %10, %85 : vector<4x128xf32>
    %87 = arith.addf %84, %86 : vector<4x128xf32>
    %cst_13 = arith.constant 2.000000e+00 : f32
    %88 = vector.broadcast %cst_13 : f32 to vector<4x128xf32>
    %89 = arith.mulf %88, %82 : vector<4x128xf32>
    %90 = arith.mulf %89, %87 : vector<4x128xf32>
    %91 = vector.extract_strided_slice %2 {offsets = [12, 0], sizes = [4, 128], strides = [1, 1]} : vector<16x128xf32> to vector<4x128xf32>
    %92 = arith.mulf %91, %82 : vector<4x128xf32>
    %93 = arith.addf %75, %92 : vector<4x128xf32>
    %94 = vector.extract_strided_slice %3 {offsets = [12, 0], sizes = [4, 128], strides = [1, 1]} : vector<16x128xf32> to vector<4x128xf32>
    %95 = arith.mulf %94, %90 : vector<4x128xf32>
    %96 = arith.addf %93, %95 : vector<4x128xf32>
    %97 = arith.subf %8, %96 : vector<4x128xf32>
    %cst_14 = arith.constant 0.00999999977 : f32
    %98 = vector.broadcast %cst_14 : f32 to vector<4x128xf32>
    %99 = arith.mulf %97, %98 : vector<4x128xf32>
    %cst_15 = arith.constant 5.000000e-01 : f32
    %100 = vector.broadcast %cst_15 : f32 to vector<4x128xf32>
    %101 = arith.mulf %100, %99 : vector<4x128xf32>
    %102 = arith.addf %9, %101 : vector<4x128xf32>
    %103 = math.sin %102 : vector<4x128xf32>
    %104 = math.cos %102 : vector<4x128xf32>
    %cst_16 = arith.constant 0.000000e+00 : f32
    %105 = vector.broadcast %cst_16 : f32 to vector<4x128xf32>
    %106 = vector.extract_strided_slice %103 {offsets = [0, 0], sizes = [1, 128], strides = [1, 1]} : vector<4x128xf32> to vector<1x128xf32>
    %107 = vector.extract_strided_slice %104 {offsets = [0, 0], sizes = [1, 128], strides = [1, 1]} : vector<4x128xf32> to vector<1x128xf32>
    %108 = vector.broadcast %107 : vector<1x128xf32> to vector<4x128xf32>
    %109 = arith.mulf %103, %108 : vector<4x128xf32>
    %110 = vector.broadcast %106 : vector<1x128xf32> to vector<4x128xf32>
    %111 = arith.mulf %104, %110 : vector<4x128xf32>
    %112 = arith.subf %109, %111 : vector<4x128xf32>
    %113 = vector.broadcast %107 : vector<1x128xf32> to vector<4x128xf32>
    %114 = arith.mulf %104, %113 : vector<4x128xf32>
    %115 = vector.broadcast %106 : vector<1x128xf32> to vector<4x128xf32>
    %116 = arith.mulf %103, %115 : vector<4x128xf32>
    %117 = arith.addf %114, %116 : vector<4x128xf32>
    %cst_17 = arith.constant 2.000000e+00 : f32
    %118 = vector.broadcast %cst_17 : f32 to vector<4x128xf32>
    %119 = arith.mulf %118, %112 : vector<4x128xf32>
    %120 = arith.mulf %119, %117 : vector<4x128xf32>
    %121 = vector.extract_strided_slice %2 {offsets = [0, 0], sizes = [4, 128], strides = [1, 1]} : vector<16x128xf32> to vector<4x128xf32>
    %122 = arith.mulf %121, %112 : vector<4x128xf32>
    %123 = arith.addf %105, %122 : vector<4x128xf32>
    %124 = vector.extract_strided_slice %3 {offsets = [0, 0], sizes = [4, 128], strides = [1, 1]} : vector<16x128xf32> to vector<4x128xf32>
    %125 = arith.mulf %124, %120 : vector<4x128xf32>
    %126 = arith.addf %123, %125 : vector<4x128xf32>
    %127 = vector.extract_strided_slice %103 {offsets = [1, 0], sizes = [1, 128], strides = [1, 1]} : vector<4x128xf32> to vector<1x128xf32>
    %128 = vector.extract_strided_slice %104 {offsets = [1, 0], sizes = [1, 128], strides = [1, 1]} : vector<4x128xf32> to vector<1x128xf32>
    %129 = vector.broadcast %128 : vector<1x128xf32> to vector<4x128xf32>
    %130 = arith.mulf %103, %129 : vector<4x128xf32>
    %131 = vector.broadcast %127 : vector<1x128xf32> to vector<4x128xf32>
    %132 = arith.mulf %104, %131 : vector<4x128xf32>
    %133 = arith.subf %130, %132 : vector<4x128xf32>
    %134 = vector.broadcast %128 : vector<1x128xf32> to vector<4x128xf32>
    %135 = arith.mulf %104, %134 : vector<4x128xf32>
    %136 = vector.broadcast %127 : vector<1x128xf32> to vector<4x128xf32>
    %137 = arith.mulf %103, %136 : vector<4x128xf32>
    %138 = arith.addf %135, %137 : vector<4x128xf32>
    %cst_18 = arith.constant 2.000000e+00 : f32
    %139 = vector.broadcast %cst_18 : f32 to vector<4x128xf32>
    %140 = arith.mulf %139, %133 : vector<4x128xf32>
    %141 = arith.mulf %140, %138 : vector<4x128xf32>
    %142 = vector.extract_strided_slice %2 {offsets = [4, 0], sizes = [4, 128], strides = [1, 1]} : vector<16x128xf32> to vector<4x128xf32>
    %143 = arith.mulf %142, %133 : vector<4x128xf32>
    %144 = arith.addf %126, %143 : vector<4x128xf32>
    %145 = vector.extract_strided_slice %3 {offsets = [4, 0], sizes = [4, 128], strides = [1, 1]} : vector<16x128xf32> to vector<4x128xf32>
    %146 = arith.mulf %145, %141 : vector<4x128xf32>
    %147 = arith.addf %144, %146 : vector<4x128xf32>
    %148 = vector.extract_strided_slice %103 {offsets = [2, 0], sizes = [1, 128], strides = [1, 1]} : vector<4x128xf32> to vector<1x128xf32>
    %149 = vector.extract_strided_slice %104 {offsets = [2, 0], sizes = [1, 128], strides = [1, 1]} : vector<4x128xf32> to vector<1x128xf32>
    %150 = vector.broadcast %149 : vector<1x128xf32> to vector<4x128xf32>
    %151 = arith.mulf %103, %150 : vector<4x128xf32>
    %152 = vector.broadcast %148 : vector<1x128xf32> to vector<4x128xf32>
    %153 = arith.mulf %104, %152 : vector<4x128xf32>
    %154 = arith.subf %151, %153 : vector<4x128xf32>
    %155 = vector.broadcast %149 : vector<1x128xf32> to vector<4x128xf32>
    %156 = arith.mulf %104, %155 : vector<4x128xf32>
    %157 = vector.broadcast %148 : vector<1x128xf32> to vector<4x128xf32>
    %158 = arith.mulf %103, %157 : vector<4x128xf32>
    %159 = arith.addf %156, %158 : vector<4x128xf32>
    %cst_19 = arith.constant 2.000000e+00 : f32
    %160 = vector.broadcast %cst_19 : f32 to vector<4x128xf32>
    %161 = arith.mulf %160, %154 : vector<4x128xf32>
    %162 = arith.mulf %161, %159 : vector<4x128xf32>
    %163 = vector.extract_strided_slice %2 {offsets = [8, 0], sizes = [4, 128], strides = [1, 1]} : vector<16x128xf32> to vector<4x128xf32>
    %164 = arith.mulf %163, %154 : vector<4x128xf32>
    %165 = arith.addf %147, %164 : vector<4x128xf32>
    %166 = vector.extract_strided_slice %3 {offsets = [8, 0], sizes = [4, 128], strides = [1, 1]} : vector<16x128xf32> to vector<4x128xf32>
    %167 = arith.mulf %166, %162 : vector<4x128xf32>
    %168 = arith.addf %165, %167 : vector<4x128xf32>
    %169 = vector.extract_strided_slice %103 {offsets = [3, 0], sizes = [1, 128], strides = [1, 1]} : vector<4x128xf32> to vector<1x128xf32>
    %170 = vector.extract_strided_slice %104 {offsets = [3, 0], sizes = [1, 128], strides = [1, 1]} : vector<4x128xf32> to vector<1x128xf32>
    %171 = vector.broadcast %170 : vector<1x128xf32> to vector<4x128xf32>
    %172 = arith.mulf %103, %171 : vector<4x128xf32>
    %173 = vector.broadcast %169 : vector<1x128xf32> to vector<4x128xf32>
    %174 = arith.mulf %104, %173 : vector<4x128xf32>
    %175 = arith.subf %172, %174 : vector<4x128xf32>
    %176 = vector.broadcast %170 : vector<1x128xf32> to vector<4x128xf32>
    %177 = arith.mulf %104, %176 : vector<4x128xf32>
    %178 = vector.broadcast %169 : vector<1x128xf32> to vector<4x128xf32>
    %179 = arith.mulf %103, %178 : vector<4x128xf32>
    %180 = arith.addf %177, %179 : vector<4x128xf32>
    %cst_20 = arith.constant 2.000000e+00 : f32
    %181 = vector.broadcast %cst_20 : f32 to vector<4x128xf32>
    %182 = arith.mulf %181, %175 : vector<4x128xf32>
    %183 = arith.mulf %182, %180 : vector<4x128xf32>
    %184 = vector.extract_strided_slice %2 {offsets = [12, 0], sizes = [4, 128], strides = [1, 1]} : vector<16x128xf32> to vector<4x128xf32>
    %185 = arith.mulf %184, %175 : vector<4x128xf32>
    %186 = arith.addf %168, %185 : vector<4x128xf32>
    %187 = vector.extract_strided_slice %3 {offsets = [12, 0], sizes = [4, 128], strides = [1, 1]} : vector<16x128xf32> to vector<4x128xf32>
    %188 = arith.mulf %187, %183 : vector<4x128xf32>
    %189 = arith.addf %186, %188 : vector<4x128xf32>
    %190 = arith.subf %8, %189 : vector<4x128xf32>
    %cst_21 = arith.constant 0.00999999977 : f32
    %191 = vector.broadcast %cst_21 : f32 to vector<4x128xf32>
    %192 = arith.mulf %190, %191 : vector<4x128xf32>
    %cst_22 = arith.constant 5.000000e-01 : f32
    %193 = vector.broadcast %cst_22 : f32 to vector<4x128xf32>
    %194 = arith.mulf %193, %192 : vector<4x128xf32>
    %195 = arith.addf %9, %194 : vector<4x128xf32>
    %196 = math.sin %195 : vector<4x128xf32>
    %197 = math.cos %195 : vector<4x128xf32>
    %cst_23 = arith.constant 0.000000e+00 : f32
    %198 = vector.broadcast %cst_23 : f32 to vector<4x128xf32>
    %199 = vector.extract_strided_slice %196 {offsets = [0, 0], sizes = [1, 128], strides = [1, 1]} : vector<4x128xf32> to vector<1x128xf32>
    %200 = vector.extract_strided_slice %197 {offsets = [0, 0], sizes = [1, 128], strides = [1, 1]} : vector<4x128xf32> to vector<1x128xf32>
    %201 = vector.broadcast %200 : vector<1x128xf32> to vector<4x128xf32>
    %202 = arith.mulf %196, %201 : vector<4x128xf32>
    %203 = vector.broadcast %199 : vector<1x128xf32> to vector<4x128xf32>
    %204 = arith.mulf %197, %203 : vector<4x128xf32>
    %205 = arith.subf %202, %204 : vector<4x128xf32>
    %206 = vector.broadcast %200 : vector<1x128xf32> to vector<4x128xf32>
    %207 = arith.mulf %197, %206 : vector<4x128xf32>
    %208 = vector.broadcast %199 : vector<1x128xf32> to vector<4x128xf32>
    %209 = arith.mulf %196, %208 : vector<4x128xf32>
    %210 = arith.addf %207, %209 : vector<4x128xf32>
    %cst_24 = arith.constant 2.000000e+00 : f32
    %211 = vector.broadcast %cst_24 : f32 to vector<4x128xf32>
    %212 = arith.mulf %211, %205 : vector<4x128xf32>
    %213 = arith.mulf %212, %210 : vector<4x128xf32>
    %214 = vector.extract_strided_slice %2 {offsets = [0, 0], sizes = [4, 128], strides = [1, 1]} : vector<16x128xf32> to vector<4x128xf32>
    %215 = arith.mulf %214, %205 : vector<4x128xf32>
    %216 = arith.addf %198, %215 : vector<4x128xf32>
    %217 = vector.extract_strided_slice %3 {offsets = [0, 0], sizes = [4, 128], strides = [1, 1]} : vector<16x128xf32> to vector<4x128xf32>
    %218 = arith.mulf %217, %213 : vector<4x128xf32>
    %219 = arith.addf %216, %218 : vector<4x128xf32>
    %220 = vector.extract_strided_slice %196 {offsets = [1, 0], sizes = [1, 128], strides = [1, 1]} : vector<4x128xf32> to vector<1x128xf32>
    %221 = vector.extract_strided_slice %197 {offsets = [1, 0], sizes = [1, 128], strides = [1, 1]} : vector<4x128xf32> to vector<1x128xf32>
    %222 = vector.broadcast %221 : vector<1x128xf32> to vector<4x128xf32>
    %223 = arith.mulf %196, %222 : vector<4x128xf32>
    %224 = vector.broadcast %220 : vector<1x128xf32> to vector<4x128xf32>
    %225 = arith.mulf %197, %224 : vector<4x128xf32>
    %226 = arith.subf %223, %225 : vector<4x128xf32>
    %227 = vector.broadcast %221 : vector<1x128xf32> to vector<4x128xf32>
    %228 = arith.mulf %197, %227 : vector<4x128xf32>
    %229 = vector.broadcast %220 : vector<1x128xf32> to vector<4x128xf32>
    %230 = arith.mulf %196, %229 : vector<4x128xf32>
    %231 = arith.addf %228, %230 : vector<4x128xf32>
    %cst_25 = arith.constant 2.000000e+00 : f32
    %232 = vector.broadcast %cst_25 : f32 to vector<4x128xf32>
    %233 = arith.mulf %232, %226 : vector<4x128xf32>
    %234 = arith.mulf %233, %231 : vector<4x128xf32>
    %235 = vector.extract_strided_slice %2 {offsets = [4, 0], sizes = [4, 128], strides = [1, 1]} : vector<16x128xf32> to vector<4x128xf32>
    %236 = arith.mulf %235, %226 : vector<4x128xf32>
    %237 = arith.addf %219, %236 : vector<4x128xf32>
    %238 = vector.extract_strided_slice %3 {offsets = [4, 0], sizes = [4, 128], strides = [1, 1]} : vector<16x128xf32> to vector<4x128xf32>
    %239 = arith.mulf %238, %234 : vector<4x128xf32>
    %240 = arith.addf %237, %239 : vector<4x128xf32>
    %241 = vector.extract_strided_slice %196 {offsets = [2, 0], sizes = [1, 128], strides = [1, 1]} : vector<4x128xf32> to vector<1x128xf32>
    %242 = vector.extract_strided_slice %197 {offsets = [2, 0], sizes = [1, 128], strides = [1, 1]} : vector<4x128xf32> to vector<1x128xf32>
    %243 = vector.broadcast %242 : vector<1x128xf32> to vector<4x128xf32>
    %244 = arith.mulf %196, %243 : vector<4x128xf32>
    %245 = vector.broadcast %241 : vector<1x128xf32> to vector<4x128xf32>
    %246 = arith.mulf %197, %245 : vector<4x128xf32>
    %247 = arith.subf %244, %246 : vector<4x128xf32>
    %248 = vector.broadcast %242 : vector<1x128xf32> to vector<4x128xf32>
    %249 = arith.mulf %197, %248 : vector<4x128xf32>
    %250 = vector.broadcast %241 : vector<1x128xf32> to vector<4x128xf32>
    %251 = arith.mulf %196, %250 : vector<4x128xf32>
    %252 = arith.addf %249, %251 : vector<4x128xf32>
    %cst_26 = arith.constant 2.000000e+00 : f32
    %253 = vector.broadcast %cst_26 : f32 to vector<4x128xf32>
    %254 = arith.mulf %253, %247 : vector<4x128xf32>
    %255 = arith.mulf %254, %252 : vector<4x128xf32>
    %256 = vector.extract_strided_slice %2 {offsets = [8, 0], sizes = [4, 128], strides = [1, 1]} : vector<16x128xf32> to vector<4x128xf32>
    %257 = arith.mulf %256, %247 : vector<4x128xf32>
    %258 = arith.addf %240, %257 : vector<4x128xf32>
    %259 = vector.extract_strided_slice %3 {offsets = [8, 0], sizes = [4, 128], strides = [1, 1]} : vector<16x128xf32> to vector<4x128xf32>
    %260 = arith.mulf %259, %255 : vector<4x128xf32>
    %261 = arith.addf %258, %260 : vector<4x128xf32>
    %262 = vector.extract_strided_slice %196 {offsets = [3, 0], sizes = [1, 128], strides = [1, 1]} : vector<4x128xf32> to vector<1x128xf32>
    %263 = vector.extract_strided_slice %197 {offsets = [3, 0], sizes = [1, 128], strides = [1, 1]} : vector<4x128xf32> to vector<1x128xf32>
    %264 = vector.broadcast %263 : vector<1x128xf32> to vector<4x128xf32>
    %265 = arith.mulf %196, %264 : vector<4x128xf32>
    %266 = vector.broadcast %262 : vector<1x128xf32> to vector<4x128xf32>
    %267 = arith.mulf %197, %266 : vector<4x128xf32>
    %268 = arith.subf %265, %267 : vector<4x128xf32>
    %269 = vector.broadcast %263 : vector<1x128xf32> to vector<4x128xf32>
    %270 = arith.mulf %197, %269 : vector<4x128xf32>
    %271 = vector.broadcast %262 : vector<1x128xf32> to vector<4x128xf32>
    %272 = arith.mulf %196, %271 : vector<4x128xf32>
    %273 = arith.addf %270, %272 : vector<4x128xf32>
    %cst_27 = arith.constant 2.000000e+00 : f32
    %274 = vector.broadcast %cst_27 : f32 to vector<4x128xf32>
    %275 = arith.mulf %274, %268 : vector<4x128xf32>
    %276 = arith.mulf %275, %273 : vector<4x128xf32>
    %277 = vector.extract_strided_slice %2 {offsets = [12, 0], sizes = [4, 128], strides = [1, 1]} : vector<16x128xf32> to vector<4x128xf32>
    %278 = arith.mulf %277, %268 : vector<4x128xf32>
    %279 = arith.addf %261, %278 : vector<4x128xf32>
    %280 = vector.extract_strided_slice %3 {offsets = [12, 0], sizes = [4, 128], strides = [1, 1]} : vector<16x128xf32> to vector<4x128xf32>
    %281 = arith.mulf %280, %276 : vector<4x128xf32>
    %282 = arith.addf %279, %281 : vector<4x128xf32>
    %283 = arith.subf %8, %282 : vector<4x128xf32>
    %cst_28 = arith.constant 0.00999999977 : f32
    %284 = vector.broadcast %cst_28 : f32 to vector<4x128xf32>
    %285 = arith.mulf %283, %284 : vector<4x128xf32>
    %286 = arith.addf %9, %285 : vector<4x128xf32>
    %287 = math.sin %286 : vector<4x128xf32>
    %288 = math.cos %286 : vector<4x128xf32>
    %cst_29 = arith.constant 0.000000e+00 : f32
    %289 = vector.broadcast %cst_29 : f32 to vector<4x128xf32>
    %290 = vector.extract_strided_slice %287 {offsets = [0, 0], sizes = [1, 128], strides = [1, 1]} : vector<4x128xf32> to vector<1x128xf32>
    %291 = vector.extract_strided_slice %288 {offsets = [0, 0], sizes = [1, 128], strides = [1, 1]} : vector<4x128xf32> to vector<1x128xf32>
    %292 = vector.broadcast %291 : vector<1x128xf32> to vector<4x128xf32>
    %293 = arith.mulf %287, %292 : vector<4x128xf32>
    %294 = vector.broadcast %290 : vector<1x128xf32> to vector<4x128xf32>
    %295 = arith.mulf %288, %294 : vector<4x128xf32>
    %296 = arith.subf %293, %295 : vector<4x128xf32>
    %297 = vector.broadcast %291 : vector<1x128xf32> to vector<4x128xf32>
    %298 = arith.mulf %288, %297 : vector<4x128xf32>
    %299 = vector.broadcast %290 : vector<1x128xf32> to vector<4x128xf32>
    %300 = arith.mulf %287, %299 : vector<4x128xf32>
    %301 = arith.addf %298, %300 : vector<4x128xf32>
    %cst_30 = arith.constant 2.000000e+00 : f32
    %302 = vector.broadcast %cst_30 : f32 to vector<4x128xf32>
    %303 = arith.mulf %302, %296 : vector<4x128xf32>
    %304 = arith.mulf %303, %301 : vector<4x128xf32>
    %305 = vector.extract_strided_slice %2 {offsets = [0, 0], sizes = [4, 128], strides = [1, 1]} : vector<16x128xf32> to vector<4x128xf32>
    %306 = arith.mulf %305, %296 : vector<4x128xf32>
    %307 = arith.addf %289, %306 : vector<4x128xf32>
    %308 = vector.extract_strided_slice %3 {offsets = [0, 0], sizes = [4, 128], strides = [1, 1]} : vector<16x128xf32> to vector<4x128xf32>
    %309 = arith.mulf %308, %304 : vector<4x128xf32>
    %310 = arith.addf %307, %309 : vector<4x128xf32>
    %311 = vector.extract_strided_slice %287 {offsets = [1, 0], sizes = [1, 128], strides = [1, 1]} : vector<4x128xf32> to vector<1x128xf32>
    %312 = vector.extract_strided_slice %288 {offsets = [1, 0], sizes = [1, 128], strides = [1, 1]} : vector<4x128xf32> to vector<1x128xf32>
    %313 = vector.broadcast %312 : vector<1x128xf32> to vector<4x128xf32>
    %314 = arith.mulf %287, %313 : vector<4x128xf32>
    %315 = vector.broadcast %311 : vector<1x128xf32> to vector<4x128xf32>
    %316 = arith.mulf %288, %315 : vector<4x128xf32>
    %317 = arith.subf %314, %316 : vector<4x128xf32>
    %318 = vector.broadcast %312 : vector<1x128xf32> to vector<4x128xf32>
    %319 = arith.mulf %288, %318 : vector<4x128xf32>
    %320 = vector.broadcast %311 : vector<1x128xf32> to vector<4x128xf32>
    %321 = arith.mulf %287, %320 : vector<4x128xf32>
    %322 = arith.addf %319, %321 : vector<4x128xf32>
    %cst_31 = arith.constant 2.000000e+00 : f32
    %323 = vector.broadcast %cst_31 : f32 to vector<4x128xf32>
    %324 = arith.mulf %323, %317 : vector<4x128xf32>
    %325 = arith.mulf %324, %322 : vector<4x128xf32>
    %326 = vector.extract_strided_slice %2 {offsets = [4, 0], sizes = [4, 128], strides = [1, 1]} : vector<16x128xf32> to vector<4x128xf32>
    %327 = arith.mulf %326, %317 : vector<4x128xf32>
    %328 = arith.addf %310, %327 : vector<4x128xf32>
    %329 = vector.extract_strided_slice %3 {offsets = [4, 0], sizes = [4, 128], strides = [1, 1]} : vector<16x128xf32> to vector<4x128xf32>
    %330 = arith.mulf %329, %325 : vector<4x128xf32>
    %331 = arith.addf %328, %330 : vector<4x128xf32>
    %332 = vector.extract_strided_slice %287 {offsets = [2, 0], sizes = [1, 128], strides = [1, 1]} : vector<4x128xf32> to vector<1x128xf32>
    %333 = vector.extract_strided_slice %288 {offsets = [2, 0], sizes = [1, 128], strides = [1, 1]} : vector<4x128xf32> to vector<1x128xf32>
    %334 = vector.broadcast %333 : vector<1x128xf32> to vector<4x128xf32>
    %335 = arith.mulf %287, %334 : vector<4x128xf32>
    %336 = vector.broadcast %332 : vector<1x128xf32> to vector<4x128xf32>
    %337 = arith.mulf %288, %336 : vector<4x128xf32>
    %338 = arith.subf %335, %337 : vector<4x128xf32>
    %339 = vector.broadcast %333 : vector<1x128xf32> to vector<4x128xf32>
    %340 = arith.mulf %288, %339 : vector<4x128xf32>
    %341 = vector.broadcast %332 : vector<1x128xf32> to vector<4x128xf32>
    %342 = arith.mulf %287, %341 : vector<4x128xf32>
    %343 = arith.addf %340, %342 : vector<4x128xf32>
    %cst_32 = arith.constant 2.000000e+00 : f32
    %344 = vector.broadcast %cst_32 : f32 to vector<4x128xf32>
    %345 = arith.mulf %344, %338 : vector<4x128xf32>
    %346 = arith.mulf %345, %343 : vector<4x128xf32>
    %347 = vector.extract_strided_slice %2 {offsets = [8, 0], sizes = [4, 128], strides = [1, 1]} : vector<16x128xf32> to vector<4x128xf32>
    %348 = arith.mulf %347, %338 : vector<4x128xf32>
    %349 = arith.addf %331, %348 : vector<4x128xf32>
    %350 = vector.extract_strided_slice %3 {offsets = [8, 0], sizes = [4, 128], strides = [1, 1]} : vector<16x128xf32> to vector<4x128xf32>
    %351 = arith.mulf %350, %346 : vector<4x128xf32>
    %352 = arith.addf %349, %351 : vector<4x128xf32>
    %353 = vector.extract_strided_slice %287 {offsets = [3, 0], sizes = [1, 128], strides = [1, 1]} : vector<4x128xf32> to vector<1x128xf32>
    %354 = vector.extract_strided_slice %288 {offsets = [3, 0], sizes = [1, 128], strides = [1, 1]} : vector<4x128xf32> to vector<1x128xf32>
    %355 = vector.broadcast %354 : vector<1x128xf32> to vector<4x128xf32>
    %356 = arith.mulf %287, %355 : vector<4x128xf32>
    %357 = vector.broadcast %353 : vector<1x128xf32> to vector<4x128xf32>
    %358 = arith.mulf %288, %357 : vector<4x128xf32>
    %359 = arith.subf %356, %358 : vector<4x128xf32>
    %360 = vector.broadcast %354 : vector<1x128xf32> to vector<4x128xf32>
    %361 = arith.mulf %288, %360 : vector<4x128xf32>
    %362 = vector.broadcast %353 : vector<1x128xf32> to vector<4x128xf32>
    %363 = arith.mulf %287, %362 : vector<4x128xf32>
    %364 = arith.addf %361, %363 : vector<4x128xf32>
    %cst_33 = arith.constant 2.000000e+00 : f32
    %365 = vector.broadcast %cst_33 : f32 to vector<4x128xf32>
    %366 = arith.mulf %365, %359 : vector<4x128xf32>
    %367 = arith.mulf %366, %364 : vector<4x128xf32>
    %368 = vector.extract_strided_slice %2 {offsets = [12, 0], sizes = [4, 128], strides = [1, 1]} : vector<16x128xf32> to vector<4x128xf32>
    %369 = arith.mulf %368, %359 : vector<4x128xf32>
    %370 = arith.addf %352, %369 : vector<4x128xf32>
    %371 = vector.extract_strided_slice %3 {offsets = [12, 0], sizes = [4, 128], strides = [1, 1]} : vector<16x128xf32> to vector<4x128xf32>
    %372 = arith.mulf %371, %367 : vector<4x128xf32>
    %373 = arith.addf %370, %372 : vector<4x128xf32>
    %374 = arith.subf %8, %373 : vector<4x128xf32>
    %cst_34 = arith.constant 0.00999999977 : f32
    %375 = vector.broadcast %cst_34 : f32 to vector<4x128xf32>
    %376 = arith.mulf %374, %375 : vector<4x128xf32>
    %cst_35 = arith.constant 2.000000e+00 : f32
    %377 = vector.broadcast %cst_35 : f32 to vector<4x128xf32>
    %378 = arith.mulf %377, %192 : vector<4x128xf32>
    %379 = arith.addf %99, %378 : vector<4x128xf32>
    %cst_36 = arith.constant 2.000000e+00 : f32
    %380 = vector.broadcast %cst_36 : f32 to vector<4x128xf32>
    %381 = arith.mulf %380, %285 : vector<4x128xf32>
    %382 = arith.addf %379, %381 : vector<4x128xf32>
    %383 = arith.addf %382, %376 : vector<4x128xf32>
    %cst_37 = arith.constant 0.166666672 : f32
    %384 = vector.broadcast %cst_37 : f32 to vector<4x128xf32>
    %385 = arith.mulf %383, %384 : vector<4x128xf32>
    %386 = arith.addf %9, %385 : vector<4x128xf32>
    %387 = vector.extract_strided_slice %386 {offsets = [2, 0], sizes = [1, 128], strides = [1, 1]} : vector<4x128xf32> to vector<1x128xf32>
    %388 = vector.extract_strided_slice %386 {offsets = [3, 0], sizes = [1, 128], strides = [1, 1]} : vector<4x128xf32> to vector<1x128xf32>
    %389 = arith.subf %387, %388 : vector<1x128xf32>
    %cst_38 = arith.constant 0.318309873 : f32
    %390 = math.sqrt %cst_38 : f32
    %cst_39 = arith.constant 0.000000e+00 : f32
    %391 = vector.broadcast %cst_39 : f32 to vector<1x128xf32>
    %392 = arith.subf %391, %389 : vector<1x128xf32>
    %393 = math.sin %392 : vector<1x128xf32>
    %cst_40 = arith.constant 1.000000e+00 : f32
    %394 = vector.broadcast %cst_40 : f32 to vector<1x128xf32>
    %395 = arith.subf %394, %393 : vector<1x128xf32>
    %396 = vector.broadcast %390 : f32 to vector<1x128xf32>
    %397 = arith.mulf %396, %395 : vector<1x128xf32>
    %398 = math.sin %389 : vector<1x128xf32>
    %cst_41 = arith.constant 1.000000e+00 : f32
    %399 = vector.broadcast %cst_41 : f32 to vector<1x128xf32>
    %400 = arith.subf %399, %398 : vector<1x128xf32>
    %401 = vector.broadcast %390 : f32 to vector<1x128xf32>
    %402 = arith.mulf %401, %400 : vector<1x128xf32>
    %cst_42 = arith.constant 3.14159274 : f32
    %403 = vector.broadcast %cst_42 : f32 to vector<1x128xf32>
    %404 = arith.subf %403, %389 : vector<1x128xf32>
    %405 = math.cos %404 : vector<1x128xf32>
    %cst_43 = arith.constant 1.000000e+00 : f32
    %406 = vector.broadcast %cst_43 : f32 to vector<1x128xf32>
    %407 = arith.subf %406, %405 : vector<1x128xf32>
    %408 = vector.broadcast %390 : f32 to vector<1x128xf32>
    %409 = arith.mulf %408, %407 : vector<1x128xf32>
    %410 = arith.maximumf %397, %402 : vector<1x128xf32>
    %411 = arith.maximumf %410, %409 : vector<1x128xf32>
    %412 = arith.subf %397, %411 : vector<1x128xf32>
    %413 = math.exp %412 : vector<1x128xf32>
    %414 = arith.subf %402, %411 : vector<1x128xf32>
    %415 = math.exp %414 : vector<1x128xf32>
    %416 = arith.subf %409, %411 : vector<1x128xf32>
    %417 = math.exp %416 : vector<1x128xf32>
    %418 = arith.addf %413, %415 : vector<1x128xf32>
    %419 = arith.addf %418, %417 : vector<1x128xf32>
    %cst_44 = arith.constant 1.000000e+00 : f32
    %420 = vector.broadcast %cst_44 : f32 to vector<1x128xf32>
    %421 = arith.divf %420, %419 : vector<1x128xf32>
    %422 = arith.mulf %413, %421 : vector<1x128xf32>
    %423 = arith.mulf %415, %421 : vector<1x128xf32>
    %424 = arith.mulf %417, %421 : vector<1x128xf32>
    %425 = tpu.concatenate %422, %423, %424, %389 in 0 : vector<1x128xf32>, vector<1x128xf32>, vector<1x128xf32>, vector<1x128xf32> -> vector<4x128xf32>
    %c0_45 = arith.constant 0 : index
    %c0_46 = arith.constant 0 : index
    %426 = vector.load %arg5[%c0_45, %c0_46] : memref<4x128xf32, #tpu.memory_space<vmem>>, vector<4x128xf32>
    tpu.vector_store %arg5[%c0_45, %c0_46], %425 {strides = array<i32>} : memref<4x128xf32, #tpu.memory_space<vmem>>, vector<4x128xf32>,
    return
  }
  func.func @transform_0(%arg0: i32) -> (i32, i32) {
    %c0_i32 = arith.constant 0 : i32
    %c0_i32_0 = arith.constant 0 : i32
    return %c0_i32, %arg0 : i32, i32
  }
  func.func @transform_1(%arg0: i32) -> (i32, i32) {
    %c0_i32 = arith.constant 0 : i32
    %c0_i32_0 = arith.constant 0 : i32
    return %c0_i32, %arg0 : i32, i32
  }
  func.func @transform_2(%arg0: i32) -> (i32, i32) {
    %c0_i32 = arith.constant 0 : i32
    %c0_i32_0 = arith.constant 0 : i32
    return %c0_i32, %arg0 : i32, i32
  }
  func.func @transform_3(%arg0: i32) -> (i32, i32) {
    %c0_i32 = arith.constant 0 : i32
    %c0_i32_0 = arith.constant 0 : i32
    return %c0_i32, %arg0 : i32, i32
  }
  func.func @transform_4(%arg0: i32) -> (i32, i32) {
    %c0_i32 = arith.constant 0 : i32
    %c0_i32_0 = arith.constant 0 : i32
    return %c0_i32, %arg0 : i32, i32
  }
}

</mosaic_0001>

<llo_original>
// kernel: tpu_custom_call.1
$region0: #{tpu_custom_call.1}
  #allocation0 [shape = 'u32[]', space=smem, size = 0x4, offset = 0x4, fixed_abs, tag = 'smem constant byte address 0x4 - core index']
  #allocation1 [shape = 'u32[144,128]{1,0:T(1,128)}', space=vmem, size = 0x12000, scoped, tag = 'internal scratch']
  %s0 = inlined_call_operand.hbm [shape: f32[2,128], index: 0, kind: input, shape index: {}]
  %s1 = inlined_call_operand.hbm [shape: f32[4,128], index: 1, kind: input, shape index: {}]
  %s2 = inlined_call_operand.hbm [shape: f32[16,128], index: 2, kind: input, shape index: {}]
  %s3 = inlined_call_operand.hbm [shape: f32[16,128], index: 3, kind: input, shape index: {}]
  %s4 = inlined_call_operand.hbm [shape: f32[4,128], index: 4, kind: output, shape index: {}]
  %s5 = sld [smem:[#allocation0]]
  $region42: #{tpu_custom_call.1} parent=0
    _
  %s7 = ssub.s32 1, %s5
  %s8 = scalar_select 0, %s7, %s5
  $region1: #{tpu_custom_call.1} parent=0
    #allocation2 [shape = 'u8[1024]{0}', space=vmem, size = 0x400, scoped, tag = 'input window, operand 0, single buffered']
    #allocation3 [shape = 's32[1]{0}', space=sflag, size = 0x4, scoped, tag = 'scoped memory for tpu_custom_call.1']
    #allocation4 [shape = 's32[1]{0}', space=sflag, size = 0x4, scoped, tag = 'scoped memory for tpu_custom_call.1']
    #allocation5 [shape = 'u8[2048]{0}', space=vmem, size = 0x800, scoped, tag = 'input window, operand 1, single buffered']
    #allocation6 [shape = 's32[1]{0}', space=sflag, size = 0x4, scoped, tag = 'scoped memory for tpu_custom_call.1']
    #allocation7 [shape = 'u8[8192]{0}', space=vmem, size = 0x2000, scoped, tag = 'input window, operand 2, single buffered']
    #allocation8 [shape = 'u8[8192]{0}', space=vmem, size = 0x2000, scoped, tag = 'input window, operand 3, single buffered']
    #allocation9 [shape = 's32[1]{0}', space=sflag, size = 0x4, scoped, tag = 'scoped memory for tpu_custom_call.1']
    #allocation10 [shape = 'u8[2048]{0}', space=vmem, size = 0x800, scoped, tag = 'output window, operand 0, single buffered']
    %9 = vsyncpa [#allocation3], 0
    %10 = vsyncpa [#allocation6], 0
    %11 = vsyncpa [#allocation9], 0
    %12 = vsyncpa [#allocation4], 0
    // Predicated region
    $region2: #{tpu_custom_call.1} parent=1 // pred_check
      _
    $region3: #{tpu_custom_call.1} parent=1 // pred_check_branch
      %14 = sbr.rel (0) target = $region5
    $region4: #{tpu_custom_call.1} parent=1 // pred_region
      %s16 = ssub.s32 32, 32
      %17 = vsyncadd [#allocation3], %s16
      %s19 = sshll.u32 [#allocation2], 4
      %s20 = int_to_ptr.vmem [resolvable:$true] %s19
      %22 = dma.hbm_to_vmem [thread:$0]  %s0, 32, %s20, [#allocation3]
    $region5: #{tpu_custom_call.1} parent=1 // pred_fallthru
      _
    // Predicated region
    $region6: #{tpu_custom_call.1} parent=1 // pred_check
      _
    $region7: #{tpu_custom_call.1} parent=1 // pred_check_branch
      %24 = sbr.rel (0) target = $region9
    $region8: #{tpu_custom_call.1} parent=1 // pred_region
      %s26 = ssub.s32 64, 64
      %27 = vsyncadd [#allocation6], %s26
      %s29 = sshll.u32 [#allocation5], 4
      %s30 = int_to_ptr.vmem [resolvable:$true] %s29
      %32 = dma.hbm_to_vmem [thread:$0]  %s1, 64, %s30, [#allocation6]
    $region9: #{tpu_custom_call.1} parent=1 // pred_fallthru
      _
    // Predicated region
    $region10: #{tpu_custom_call.1} parent=1 // pred_check
      _
    $region11: #{tpu_custom_call.1} parent=1 // pred_check_branch
      %34 = sbr.rel (0) target = $region13
    $region12: #{tpu_custom_call.1} parent=1 // pred_region
      %s36 = ssub.s32 256, 256
      %37 = vsyncadd [#allocation6], %s36
      %s38 = sshll.u32 [#allocation7], 4
      %s39 = int_to_ptr.vmem [resolvable:$true] %s38
      %44 = dma.hbm_to_vmem [thread:$0]  %s2, 256, %s39, [#allocation6], 128, 128, 8
    $region13: #{tpu_custom_call.1} parent=1 // pred_fallthru
      _
    // Predicated region
    $region14: #{tpu_custom_call.1} parent=1 // pred_check
      _
    $region15: #{tpu_custom_call.1} parent=1 // pred_check_branch
      %46 = sbr.rel (0) target = $region17
    $region16: #{tpu_custom_call.1} parent=1 // pred_region
      %s48 = ssub.s32 256, 256
      %49 = vsyncadd [#allocation9], %s48
      %s50 = sshll.u32 [#allocation8], 4
      %s51 = int_to_ptr.vmem [resolvable:$true] %s50
      %56 = dma.hbm_to_vmem [thread:$0]  %s3, 256, %s51, [#allocation9], 128, 128, 8
    $region17: #{tpu_custom_call.1} parent=1 // pred_fallthru
      _
    // Predicated region
    $region18: #{tpu_custom_call.1} parent=1 // pred_check
      _
    $region19: #{tpu_custom_call.1} parent=1 // pred_check_branch
      %58 = sbr.rel (0) target = $region21
    $region20: #{tpu_custom_call.1} parent=1 // pred_region
      %59 = dma.done [#allocation3], 32
    $region21: #{tpu_custom_call.1} parent=1 // pred_fallthru
      _
    // Predicated region
    $region22: #{tpu_custom_call.1} parent=1 // pred_check
      _
    $region23: #{tpu_custom_call.1} parent=1 // pred_check_branch
      %61 = sbr.rel (0) target = $region25
    $region24: #{tpu_custom_call.1} parent=1 // pred_region
      %62 = dma.done [#allocation6], 64
    $region25: #{tpu_custom_call.1} parent=1 // pred_fallthru
      _
    // Predicated region
    $region26: #{tpu_custom_call.1} parent=1 // pred_check
      _
    $region27: #{tpu_custom_call.1} parent=1 // pred_check_branch
      %64 = sbr.rel (0) target = $region29
    $region28: #{tpu_custom_call.1} parent=1 // pred_region
      %65 = dma.done [#allocation6], 256
    $region29: #{tpu_custom_call.1} parent=1 // pred_fallthru
      _
    // Predicated region
    $region30: #{tpu_custom_call.1} parent=1 // pred_check
      _
    $region31: #{tpu_custom_call.1} parent=1 // pred_check_branch
      %67 = sbr.rel (0) target = $region33
    $region32: #{tpu_custom_call.1} parent=1 // pred_region
      %68 = dma.done [#allocation9], 256
    $region33: #{tpu_custom_call.1} parent=1 // pred_fallthru
      _
    %v69 = vld [vmem:[#allocation2] sm:$0x3]
    %v70 = vld [vmem:[#allocation5] sm:$0xf]
    %v71 = vld [vmem:[#allocation7] sm:$0xff]
    %v72 = vld [vmem:[#allocation7 + $0x8] sm:$0xff]
    %v73 = vld [vmem:[#allocation8] sm:$0xff]
    %v74 = vld [vmem:[#allocation8 + $0x8] sm:$0xff]
    %v75 = vmul.f32 %v70, 6.2831855
    %vm76 = vcmask 1041408
    %v77 = vsel %vm76, %v69, 0.0
    %v78 = vadd.f32 %v75, %v77
    %v79 = vmul.f32 %v71, 0.0
    %v80 = vadd.f32 %v79, 0.0
    %v81 = vmul.f32 %v73, 0.0
    %v82 = vadd.f32 %v80, %v81
    %v84 = vrot.slane %v79, 4
    %v86 = vadd.f32 %v82, %v84
    %v88 = vrot.slane %v81, 4
    %v90 = vadd.f32 %v86, %v88
    %v91 = vmul.f32 %v72, 0.0
    %v92 = vadd.f32 %v90, %v91
    %v93 = vmul.f32 %v74, 0.0
    %v94 = vadd.f32 %v92, %v93
    %v96 = vrot.slane %v91, 4
    %v98 = vadd.f32 %v94, %v96
    %v100 = vrot.slane %v93, 4
    %v102 = vadd.f32 %v98, %v100
    %v103 = vsub.f32 %v78, %v102
    %v104 = vmul.f32 %v103, 0.01
    %v105 = vmul.f32 %v104, 0.5
    %v106 = vadd.f32 %v105, 0.0
    %v107 = vand.u32 2147483647, %v106
    %vm108 = vcmp.le.f32.partialorder %v107, 0.7853982
    %vm109 = vcmp.lt.s32.totalorder %v106, 0
    %v110 = vand.u32 %v106, 2139095040
    %v111 = vshrl.u32 %v110, 23
    %v112 = vsub.s32 %v111, 127
    %v113 = vand.u32 2147483647, %v106
    %v114 = vand.u32 %v113, 8388607
    %v115 = vor.u32 %v114, 8388608
    %v116 = vsub.s32 0, %v115
    %v117 = vadd.s32 %v112, 1
    %vm118 = vcmp.gt.s32.totalorder %v117, 0
    %v119 = vsel %vm118, %v117, 0
    %v120 = vshrl.u32 %v119, 5
    %v121 = vand.u32 %v119, 31
    %v122 = vsub.s32 32, %v121
    %v123 = vshrl.u32 683565275, %v122
    %v124 = vshll.u32 683565275, %v121
    %v125 = vshrl.u32 2475754826, %v122
    %v126 = vor.u32 %v124, %v125
    %v127 = vshll.u32 2475754826, %v121
    %v128 = vshrl.u32 2131351028, %v122
    %v129 = vor.u32 %v127, %v128
    %v130 = vshll.u32 2131351028, %v121
    %v131 = vshrl.u32 2102212464, %v122
    %v132 = vor.u32 %v130, %v131
    %v133 = vshll.u32 2102212464, %v121
    %v134 = vshrl.u32 920167782, %v122
    %v135 = vor.u32 %v133, %v134
    %v136 = vshll.u32 920167782, %v121
    %v137 = vshrl.u32 1326507024, %v122
    %v138 = vor.u32 %v136, %v137
    %vm139 = vcmp.lt.s32.totalorder %v120, 1
    %vm140 = vcmp.lt.s32.totalorder %v120, 2
    %vm141 = vcmp.lt.s32.totalorder %v120, 3
    %vm142 = vcmp.lt.s32.totalorder %v120, 4
    %v143 = vsel %vm139, %v123, %v126
    %v144 = vsel %vm142, %v132, 2102212464
    %v145 = vsel %vm141, %v129, %v144
    %v146 = vsel %vm140, %v143, %v145
    %v147 = vsel %vm139, %v126, %v129
    %v148 = vsel %vm142, %v135, 920167782
    %v149 = vsel %vm141, %v132, %v148
    %v150 = vsel %vm140, %v147, %v149
    %v151 = vsel %vm139, %v129, %v132
    %v152 = vsel %vm142, %v138, 1326507024
    %v153 = vsel %vm141, %v135, %v152
    %v154 = vsel %vm140, %v151, %v153
    %v155 = vshll.u32 %v115, 8
    %v156 = vmul.u32.u64.compose %v155, %v154
    %v157 = vextract.low.u32 %v156
    %v158 = vextract.high.u32 %v156
    %v159 = vmul.u32.u64.compose %v155, %v150
    %v160 = vextract.low.u32 %v159
    %v161 = vextract.high.u32 %v159
    %v162 = vmul.u32 %v155, %v146
    %v163 = vadd.s32 %v158, %v160
    %vm164 = vc.u32 %v158, %v160
    %v165 = vadd.s32 %v161, 1
    %v166 = vsel %vm164, %v165, %v161
    %v167 = vadd.s32 %v162, %v166
    %v168 = vadd.s32 %v167, 536870912
    %v169 = vshrl.u32 %v168, 30
    %v170 = vshll.u32 %v169, 30
    %v171 = vsub.s32 %v167, %v170
    %vm172 = vcmp.lt.s32.totalorder %v171, 0
    %v173 = vsub.s32 0, %v171
    %v174 = vsel %vm172, %v173, %v171
    %v175 = vclz %v174
    %v176 = vsub.s32 %v175, 2
    %vm177 = vcmp.gt.s32.totalorder 0, %v176
    %v178 = vsel %vm177, 0, %v176
    %v179 = vsub.s32 32, %v178
    %v180 = vshll.u32 %v171, %v178
    %v181 = vshrl.u32 %v163, %v179
    %v182 = vor.u32 %v180, %v181
    %v183 = vsub.s32 4294967266, %v178
    %v184 = vadd.s32 %v183, 127
    %v185 = vshll.u32 %v184, 23
    %v186 = vor.u32 4788187, %v185
    %v187 = vand.u32 2147483647, %v186
    %v189 = vcvt.s32.f32 %v182
    %v190 = vmul.f32 %v189, %v187
    %v191 = vxor.u32 %v190, 2147483648
    %v192 = vsel %vm109, %v191, %v190
    %v193 = vsub.s32 4, %v169
    %v194 = vsel %vm109, %v193, %v169
    %v195 = vsel %vm108, %v106, %v192
    %v196 = vsel %vm108, 0, %v194
    %v197 = vcosq.f32.pop %v195
    %v198 = vsinq.f32.pop %v195
    %vm199 = vweird.f32 %v106
    %v200 = vadd.s32 %v196, 3
    %v201 = vand.u32 %v200, 3
    %vm202 = vcmp.lt.s32.totalorder %v201, 2
    %vm203 = vcmp.eq.s32.totalorder %v201, 0
    %v204 = vxor.u32 %v198, 2147483648
    %v205 = vsel %vm203, %v197, %v204
    %vm206 = vcmp.eq.s32.totalorder %v201, 2
    %v207 = vxor.u32 %v197, 2147483648
    %v208 = vsel %vm206, %v207, %v198
    %v209 = vsel %vm202, %v205, %v208
    %v210 = vsel %vm199, nan, %v209
    %v211 = vand.u32 2147483647, %v106
    %vm212 = vcmp.le.f32.partialorder %v211, 0.7853982
    %vm213 = vcmp.lt.s32.totalorder %v106, 0
    %v214 = vand.u32 %v106, 2139095040
    %v215 = vshrl.u32 %v214, 23
    %v216 = vsub.s32 %v215, 127
    %v217 = vand.u32 2147483647, %v106
    %v218 = vand.u32 %v217, 8388607
    %v219 = vor.u32 %v218, 8388608
    %v220 = vsub.s32 0, %v219
    %v221 = vadd.s32 %v216, 1
    %vm222 = vcmp.gt.s32.totalorder %v221, 0
    %v223 = vsel %vm222, %v221, 0
    %v224 = vshrl.u32 %v223, 5
    %v225 = vand.u32 %v223, 31
    %v226 = vsub.s32 32, %v225
    %v227 = vshrl.u32 683565275, %v226
    %v228 = vshll.u32 683565275, %v225
    %v229 = vshrl.u32 2475754826, %v226
    %v230 = vor.u32 %v228, %v229
    %v231 = vshll.u32 2475754826, %v225
    %v232 = vshrl.u32 2131351028, %v226
    %v233 = vor.u32 %v231, %v232
    %v234 = vshll.u32 2131351028, %v225
    %v235 = vshrl.u32 2102212464, %v226
    %v236 = vor.u32 %v234, %v235
    %v237 = vshll.u32 2102212464, %v225
    %v238 = vshrl.u32 920167782, %v226
    %v239 = vor.u32 %v237, %v238
    %v240 = vshll.u32 920167782, %v225
    %v241 = vshrl.u32 1326507024, %v226
    %v242 = vor.u32 %v240, %v241
    %vm243 = vcmp.lt.s32.totalorder %v224, 1
    %vm244 = vcmp.lt.s32.totalorder %v224, 2
    %vm245 = vcmp.lt.s32.totalorder %v224, 3
    %vm246 = vcmp.lt.s32.totalorder %v224, 4
    %v247 = vsel %vm243, %v227, %v230
    %v248 = vsel %vm246, %v236, 2102212464
    %v249 = vsel %vm245, %v233, %v248
    %v250 = vsel %vm244, %v247, %v249
    %v251 = vsel %vm243, %v230, %v233
    %v252 = vsel %vm246, %v239, 920167782
    %v253 = vsel %vm245, %v236, %v252
    %v254 = vsel %vm244, %v251, %v253
    %v255 = vsel %vm243, %v233, %v236
    %v256 = vsel %vm246, %v242, 1326507024
    %v257 = vsel %vm245, %v239, %v256
    %v258 = vsel %vm244, %v255, %v257
    %v259 = vshll.u32 %v219, 8
    %v260 = vmul.u32.u64.compose %v259, %v258
    %v261 = vextract.low.u32 %v260
    %v262 = vextract.high.u32 %v260
    %v263 = vmul.u32.u64.compose %v259, %v254
    %v264 = vextract.low.u32 %v263
    %v265 = vextract.high.u32 %v263
    %v266 = vmul.u32 %v259, %v250
    %v267 = vadd.s32 %v262, %v264
    %vm268 = vc.u32 %v262, %v264
    %v269 = vadd.s32 %v265, 1
    %v270 = vsel %vm268, %v269, %v265
    %v271 = vadd.s32 %v266, %v270
    %v272 = vadd.s32 %v271, 536870912
    %v273 = vshrl.u32 %v272, 30
    %v274 = vshll.u32 %v273, 30
    %v275 = vsub.s32 %v271, %v274
    %vm276 = vcmp.lt.s32.totalorder %v275, 0
    %v277 = vsub.s32 0, %v275
    %v278 = vsel %vm276, %v277, %v275
    %v279 = vclz %v278
    %v280 = vsub.s32 %v279, 2
    %vm281 = vcmp.gt.s32.totalorder 0, %v280
    %v282 = vsel %vm281, 0, %v280
    %v283 = vsub.s32 32, %v282
    %v284 = vshll.u32 %v275, %v282
    %v285 = vshrl.u32 %v267, %v283
    %v286 = vor.u32 %v284, %v285
    %v287 = vsub.s32 4294967266, %v282
    %v288 = vadd.s32 %v287, 127
    %v289 = vshll.u32 %v288, 23
    %v290 = vor.u32 4788187, %v289
    %v291 = vand.u32 2147483647, %v290
    %v293 = vcvt.s32.f32 %v286
    %v294 = vmul.f32 %v293, %v291
    %v295 = vxor.u32 %v294, 2147483648
    %v296 = vsel %vm213, %v295, %v294
    %v297 = vsub.s32 4, %v273
    %v298 = vsel %vm213, %v297, %v273
    %v299 = vsel %vm212, %v106, %v296
    %v300 = vsel %vm212, 0, %v298
    %v301 = vcosq.f32.pop %v299
    %v302 = vsinq.f32.pop %v299
    %vm303 = vweird.f32 %v106
    %v304 = vand.u32 %v300, 3
    %vm305 = vcmp.lt.s32.totalorder %v304, 2
    %vm306 = vcmp.eq.s32.totalorder %v304, 0
    %v307 = vxor.u32 %v302, 2147483648
    %v308 = vsel %vm306, %v301, %v307
    %vm309 = vcmp.eq.s32.totalorder %v304, 2
    %v310 = vxor.u32 %v301, 2147483648
    %v311 = vsel %vm309, %v310, %v302
    %v312 = vsel %vm305, %v308, %v311
    %v313 = vsel %vm303, nan, %v312
    %v314 = vlaneseq
    %v315 = vshrl.u32 %v314, 7
    %v316 = vsub.s32 0, %v315
    %v317 = vrot.slane %v313, %v316
    %v318 = vmul.f32 %v210, %v317
    %v319 = vlaneseq
    %v320 = vshrl.u32 %v319, 7
    %v321 = vsub.s32 0, %v320
    %v322 = vrot.slane %v210, %v321
    %v323 = vmul.f32 %v313, %v322
    %v324 = vsub.f32 %v318, %v323
    %v325 = vmul.f32 %v313, %v317
    %v326 = vmul.f32 %v210, %v322
    %v327 = vadd.f32 %v325, %v326
    %v328 = vmul.f32 %v324, 2.0
    %v329 = vmul.f32 %v328, %v327
    %v330 = vmul.f32 %v71, %v324
    %v331 = vadd.f32 %v330, 0.0
    %v332 = vmul.f32 %v73, %v329
    %v333 = vadd.f32 %v331, %v332
    %v334 = vlaneseq
    %v335 = vshrl.u32 %v334, 7
    %v336 = vsub.s32 1, %v335
    %v337 = vrot.slane %v313, %v336
    %v338 = vmul.f32 %v210, %v337
    %v339 = vlaneseq
    %v340 = vshrl.u32 %v339, 7
    %v341 = vsub.s32 1, %v340
    %v342 = vrot.slane %v210, %v341
    %v343 = vmul.f32 %v313, %v342
    %v344 = vsub.f32 %v338, %v343
    %v345 = vmul.f32 %v313, %v337
    %v346 = vmul.f32 %v210, %v342
    %v347 = vadd.f32 %v345, %v346
    %v348 = vmul.f32 %v344, 2.0
    %v349 = vmul.f32 %v348, %v347
    %v351 = vrot.slane %v344, 4
    %v353 = vmul.f32 %v71, %v351
    %v355 = vrot.slane %v353, 4
    %v357 = vadd.f32 %v333, %v355
    %v359 = vrot.slane %v349, 4
    %v361 = vmul.f32 %v73, %v359
    %v363 = vrot.slane %v361, 4
    %v365 = vadd.f32 %v357, %v363
    %v366 = vlaneseq
    %v367 = vshrl.u32 %v366, 7
    %v368 = vsub.s32 2, %v367
    %v369 = vrot.slane %v313, %v368
    %v370 = vmul.f32 %v210, %v369
    %v371 = vlaneseq
    %v372 = vshrl.u32 %v371, 7
    %v373 = vsub.s32 2, %v372
    %v374 = vrot.slane %v210, %v373
    %v375 = vmul.f32 %v313, %v374
    %v376 = vsub.f32 %v370, %v375
    %v377 = vmul.f32 %v313, %v369
    %v378 = vmul.f32 %v210, %v374
    %v379 = vadd.f32 %v377, %v378
    %v380 = vmul.f32 %v376, 2.0
    %v381 = vmul.f32 %v380, %v379
    %v382 = vmul.f32 %v72, %v376
    %v383 = vadd.f32 %v365, %v382
    %v384 = vmul.f32 %v74, %v381
    %v385 = vadd.f32 %v383, %v384
    %v386 = vlaneseq
    %v387 = vshrl.u32 %v386, 7
    %v388 = vsub.s32 3, %v387
    %v389 = vrot.slane %v313, %v388
    %v390 = vmul.f32 %v210, %v389
    %v391 = vlaneseq
    %v392 = vshrl.u32 %v391, 7
    %v393 = vsub.s32 3, %v392
    %v394 = vrot.slane %v210, %v393
    %v395 = vmul.f32 %v313, %v394
    %v396 = vsub.f32 %v390, %v395
    %v397 = vmul.f32 %v313, %v389
    %v398 = vmul.f32 %v210, %v394
    %v399 = vadd.f32 %v397, %v398
    %v400 = vmul.f32 %v396, 2.0
    %v401 = vmul.f32 %v400, %v399
    %v403 = vrot.slane %v396, 4
    %v405 = vmul.f32 %v72, %v403
    %v407 = vrot.slane %v405, 4
    %v409 = vadd.f32 %v385, %v407
    %v411 = vrot.slane %v401, 4
    %v413 = vmul.f32 %v74, %v411
    %v415 = vrot.slane %v413, 4
    %v417 = vadd.f32 %v409, %v415
    %v418 = vsub.f32 %v78, %v417
    %v419 = vmul.f32 %v418, 0.01
    %v420 = vmul.f32 %v419, 0.5
    %v421 = vadd.f32 %v420, 0.0
    %v422 = vand.u32 2147483647, %v421
    %vm423 = vcmp.le.f32.partialorder %v422, 0.7853982
    %vm424 = vcmp.lt.s32.totalorder %v421, 0
    %v425 = vand.u32 %v421, 2139095040
    %v426 = vshrl.u32 %v425, 23
    %v427 = vsub.s32 %v426, 127
    %v428 = vand.u32 2147483647, %v421
    %v429 = vand.u32 %v428, 8388607
    %v430 = vor.u32 %v429, 8388608
    %v431 = vsub.s32 0, %v430
    %v432 = vadd.s32 %v427, 1
    %vm433 = vcmp.gt.s32.totalorder %v432, 0
    %v434 = vsel %vm433, %v432, 0
    %v435 = vshrl.u32 %v434, 5
    %v436 = vand.u32 %v434, 31
    %v437 = vsub.s32 32, %v436
    %v438 = vshrl.u32 683565275, %v437
    %v439 = vshll.u32 683565275, %v436
    %v440 = vshrl.u32 2475754826, %v437
    %v441 = vor.u32 %v439, %v440
    %v442 = vshll.u32 2475754826, %v436
    %v443 = vshrl.u32 2131351028, %v437
    %v444 = vor.u32 %v442, %v443
    %v445 = vshll.u32 2131351028, %v436
    %v446 = vshrl.u32 2102212464, %v437
    %v447 = vor.u32 %v445, %v446
    %v448 = vshll.u32 2102212464, %v436
    %v449 = vshrl.u32 920167782, %v437
    %v450 = vor.u32 %v448, %v449
    %v451 = vshll.u32 920167782, %v436
    %v452 = vshrl.u32 1326507024, %v437
    %v453 = vor.u32 %v451, %v452
    %vm454 = vcmp.lt.s32.totalorder %v435, 1
    %vm455 = vcmp.lt.s32.totalorder %v435, 2
    %vm456 = vcmp.lt.s32.totalorder %v435, 3
    %vm457 = vcmp.lt.s32.totalorder %v435, 4
    %v458 = vsel %vm454, %v438, %v441
    %v459 = vsel %vm457, %v447, 2102212464
    %v460 = vsel %vm456, %v444, %v459
    %v461 = vsel %vm455, %v458, %v460
    %v462 = vsel %vm454, %v441, %v444
    %v463 = vsel %vm457, %v450, 920167782
    %v464 = vsel %vm456, %v447, %v463
    %v465 = vsel %vm455, %v462, %v464
    %v466 = vsel %vm454, %v444, %v447
    %v467 = vsel %vm457, %v453, 1326507024
    %v468 = vsel %vm456, %v450, %v467
    %v469 = vsel %vm455, %v466, %v468
    %v470 = vshll.u32 %v430, 8
    %v471 = vmul.u32.u64.compose %v470, %v469
    %v472 = vextract.low.u32 %v471
    %v473 = vextract.high.u32 %v471
    %v474 = vmul.u32.u64.compose %v470, %v465
    %v475 = vextract.low.u32 %v474
    %v476 = vextract.high.u32 %v474
    %v477 = vmul.u32 %v470, %v461
    %v478 = vadd.s32 %v473, %v475
    %vm479 = vc.u32 %v473, %v475
    %v480 = vadd.s32 %v476, 1
    %v481 = vsel %vm479, %v480, %v476
    %v482 = vadd.s32 %v477, %v481
    %v483 = vadd.s32 %v482, 536870912
    %v484 = vshrl.u32 %v483, 30
    %v485 = vshll.u32 %v484, 30
    %v486 = vsub.s32 %v482, %v485
    %vm487 = vcmp.lt.s32.totalorder %v486, 0
    %v488 = vsub.s32 0, %v486
    %v489 = vsel %vm487, %v488, %v486
    %v490 = vclz %v489
    %v491 = vsub.s32 %v490, 2
    %vm492 = vcmp.gt.s32.totalorder 0, %v491
    %v493 = vsel %vm492, 0, %v491
    %v494 = vsub.s32 32, %v493
    %v495 = vshll.u32 %v486, %v493
    %v496 = vshrl.u32 %v478, %v494
    %v497 = vor.u32 %v495, %v496
    %v498 = vsub.s32 4294967266, %v493
    %v499 = vadd.s32 %v498, 127
    %v500 = vshll.u32 %v499, 23
    %v501 = vor.u32 4788187, %v500
    %v502 = vand.u32 2147483647, %v501
    %v504 = vcvt.s32.f32 %v497
    %v505 = vmul.f32 %v504, %v502
    %v506 = vxor.u32 %v505, 2147483648
    %v507 = vsel %vm424, %v506, %v505
    %v508 = vsub.s32 4, %v484
    %v509 = vsel %vm424, %v508, %v484
    %v510 = vsel %vm423, %v421, %v507
    %v511 = vsel %vm423, 0, %v509
    %v512 = vcosq.f32.pop %v510
    %v513 = vsinq.f32.pop %v510
    %vm514 = vweird.f32 %v421
    %v515 = vadd.s32 %v511, 3
    %v516 = vand.u32 %v515, 3
    %vm517 = vcmp.lt.s32.totalorder %v516, 2
    %vm518 = vcmp.eq.s32.totalorder %v516, 0
    %v519 = vxor.u32 %v513, 2147483648
    %v520 = vsel %vm518, %v512, %v519
    %vm521 = vcmp.eq.s32.totalorder %v516, 2
    %v522 = vxor.u32 %v512, 2147483648
    %v523 = vsel %vm521, %v522, %v513
    %v524 = vsel %vm517, %v520, %v523
    %v525 = vsel %vm514, nan, %v524
    %v526 = vand.u32 2147483647, %v421
    %vm527 = vcmp.le.f32.partialorder %v526, 0.7853982
    %vm528 = vcmp.lt.s32.totalorder %v421, 0
    %v529 = vand.u32 %v421, 2139095040
    %v530 = vshrl.u32 %v529, 23
    %v531 = vsub.s32 %v530, 127
    %v532 = vand.u32 2147483647, %v421
    %v533 = vand.u32 %v532, 8388607
    %v534 = vor.u32 %v533, 8388608
    %v535 = vsub.s32 0, %v534
    %v536 = vadd.s32 %v531, 1
    %vm537 = vcmp.gt.s32.totalorder %v536, 0
    %v538 = vsel %vm537, %v536, 0
    %v539 = vshrl.u32 %v538, 5
    %v540 = vand.u32 %v538, 31
    %v541 = vsub.s32 32, %v540
    %v542 = vshrl.u32 683565275, %v541
    %v543 = vshll.u32 683565275, %v540
    %v544 = vshrl.u32 2475754826, %v541
    %v545 = vor.u32 %v543, %v544
    %v546 = vshll.u32 2475754826, %v540
    %v547 = vshrl.u32 2131351028, %v541
    %v548 = vor.u32 %v546, %v547
    %v549 = vshll.u32 2131351028, %v540
    %v550 = vshrl.u32 2102212464, %v541
    %v551 = vor.u32 %v549, %v550
    %v552 = vshll.u32 2102212464, %v540
    %v553 = vshrl.u32 920167782, %v541
    %v554 = vor.u32 %v552, %v553
    %v555 = vshll.u32 920167782, %v540
    %v556 = vshrl.u32 1326507024, %v541
    %v557 = vor.u32 %v555, %v556
    %vm558 = vcmp.lt.s32.totalorder %v539, 1
    %vm559 = vcmp.lt.s32.totalorder %v539, 2
    %vm560 = vcmp.lt.s32.totalorder %v539, 3
    %vm561 = vcmp.lt.s32.totalorder %v539, 4
    %v562 = vsel %vm558, %v542, %v545
    %v563 = vsel %vm561, %v551, 2102212464
    %v564 = vsel %vm560, %v548, %v563
    %v565 = vsel %vm559, %v562, %v564
    %v566 = vsel %vm558, %v545, %v548
    %v567 = vsel %vm561, %v554, 920167782
    %v568 = vsel %vm560, %v551, %v567
    %v569 = vsel %vm559, %v566, %v568
    %v570 = vsel %vm558, %v548, %v551
    %v571 = vsel %vm561, %v557, 1326507024
    %v572 = vsel %vm560, %v554, %v571
    %v573 = vsel %vm559, %v570, %v572
    %v574 = vshll.u32 %v534, 8
    %v575 = vmul.u32.u64.compose %v574, %v573
    %v576 = vextract.low.u32 %v575
    %v577 = vextract.high.u32 %v575
    %v578 = vmul.u32.u64.compose %v574, %v569
    %v579 = vextract.low.u32 %v578
    %v580 = vextract.high.u32 %v578
    %v581 = vmul.u32 %v574, %v565
    %v582 = vadd.s32 %v577, %v579
    %vm583 = vc.u32 %v577, %v579
    %v584 = vadd.s32 %v580, 1
    %v585 = vsel %vm583, %v584, %v580
    %v586 = vadd.s32 %v581, %v585
    %v587 = vadd.s32 %v586, 536870912
    %v588 = vshrl.u32 %v587, 30
    %v589 = vshll.u32 %v588, 30
    %v590 = vsub.s32 %v586, %v589
    %vm591 = vcmp.lt.s32.totalorder %v590, 0
    %v592 = vsub.s32 0, %v590
    %v593 = vsel %vm591, %v592, %v590
    %v594 = vclz %v593
    %v595 = vsub.s32 %v594, 2
    %vm596 = vcmp.gt.s32.totalorder 0, %v595
    %v597 = vsel %vm596, 0, %v595
    %v598 = vsub.s32 32, %v597
    %v599 = vshll.u32 %v590, %v597
    %v600 = vshrl.u32 %v582, %v598
    %v601 = vor.u32 %v599, %v600
    %v602 = vsub.s32 4294967266, %v597
    %v603 = vadd.s32 %v602, 127
    %v604 = vshll.u32 %v603, 23
    %v605 = vor.u32 4788187, %v604
    %v606 = vand.u32 2147483647, %v605
    %v608 = vcvt.s32.f32 %v601
    %v609 = vmul.f32 %v608, %v606
    %v610 = vxor.u32 %v609, 2147483648
    %v611 = vsel %vm528, %v610, %v609
    %v612 = vsub.s32 4, %v588
    %v613 = vsel %vm528, %v612, %v588
    %v614 = vsel %vm527, %v421, %v611
    %v615 = vsel %vm527, 0, %v613
    %v616 = vcosq.f32.pop %v614
    %v617 = vsinq.f32.pop %v614
    %vm618 = vweird.f32 %v421
    %v619 = vand.u32 %v615, 3
    %vm620 = vcmp.lt.s32.totalorder %v619, 2
    %vm621 = vcmp.eq.s32.totalorder %v619, 0
    %v622 = vxor.u32 %v617, 2147483648
    %v623 = vsel %vm621, %v616, %v622
    %vm624 = vcmp.eq.s32.totalorder %v619, 2
    %v625 = vxor.u32 %v616, 2147483648
    %v626 = vsel %vm624, %v625, %v617
    %v627 = vsel %vm620, %v623, %v626
    %v628 = vsel %vm618, nan, %v627
    %v629 = vlaneseq
    %v630 = vshrl.u32 %v629, 7
    %v631 = vsub.s32 0, %v630
    %v632 = vrot.slane %v628, %v631
    %v633 = vmul.f32 %v525, %v632
    %v634 = vlaneseq
    %v635 = vshrl.u32 %v634, 7
    %v636 = vsub.s32 0, %v635
    %v637 = vrot.slane %v525, %v636
    %v638 = vmul.f32 %v628, %v637
    %v639 = vsub.f32 %v633, %v638
    %v640 = vmul.f32 %v628, %v632
    %v641 = vmul.f32 %v525, %v637
    %v642 = vadd.f32 %v640, %v641
    %v643 = vmul.f32 %v639, 2.0
    %v644 = vmul.f32 %v643, %v642
    %v645 = vmul.f32 %v71, %v639
    %v646 = vadd.f32 %v645, 0.0
    %v647 = vmul.f32 %v73, %v644
    %v648 = vadd.f32 %v646, %v647
    %v649 = vlaneseq
    %v650 = vshrl.u32 %v649, 7
    %v651 = vsub.s32 1, %v650
    %v652 = vrot.slane %v628, %v651
    %v653 = vmul.f32 %v525, %v652
    %v654 = vlaneseq
    %v655 = vshrl.u32 %v654, 7
    %v656 = vsub.s32 1, %v655
    %v657 = vrot.slane %v525, %v656
    %v658 = vmul.f32 %v628, %v657
    %v659 = vsub.f32 %v653, %v658
    %v660 = vmul.f32 %v628, %v652
    %v661 = vmul.f32 %v525, %v657
    %v662 = vadd.f32 %v660, %v661
    %v663 = vmul.f32 %v659, 2.0
    %v664 = vmul.f32 %v663, %v662
    %v666 = vrot.slane %v659, 4
    %v668 = vmul.f32 %v71, %v666
    %v670 = vrot.slane %v668, 4
    %v672 = vadd.f32 %v648, %v670
    %v674 = vrot.slane %v664, 4
    %v676 = vmul.f32 %v73, %v674
    %v678 = vrot.slane %v676, 4
    %v680 = vadd.f32 %v672, %v678
    %v681 = vlaneseq
    %v682 = vshrl.u32 %v681, 7
    %v683 = vsub.s32 2, %v682
    %v684 = vrot.slane %v628, %v683
    %v685 = vmul.f32 %v525, %v684
    %v686 = vlaneseq
    %v687 = vshrl.u32 %v686, 7
    %v688 = vsub.s32 2, %v687
    %v689 = vrot.slane %v525, %v688
    %v690 = vmul.f32 %v628, %v689
    %v691 = vsub.f32 %v685, %v690
    %v692 = vmul.f32 %v628, %v684
    %v693 = vmul.f32 %v525, %v689
    %v694 = vadd.f32 %v692, %v693
    %v695 = vmul.f32 %v691, 2.0
    %v696 = vmul.f32 %v695, %v694
    %v697 = vmul.f32 %v72, %v691
    %v698 = vadd.f32 %v680, %v697
    %v699 = vmul.f32 %v74, %v696
    %v700 = vadd.f32 %v698, %v699
    %v701 = vlaneseq
    %v702 = vshrl.u32 %v701, 7
    %v703 = vsub.s32 3, %v702
    %v704 = vrot.slane %v628, %v703
    %v705 = vmul.f32 %v525, %v704
    %v706 = vlaneseq
    %v707 = vshrl.u32 %v706, 7
    %v708 = vsub.s32 3, %v707
    %v709 = vrot.slane %v525, %v708
    %v710 = vmul.f32 %v628, %v709
    %v711 = vsub.f32 %v705, %v710
    %v712 = vmul.f32 %v628, %v704
    %v713 = vmul.f32 %v525, %v709
    %v714 = vadd.f32 %v712, %v713
    %v715 = vmul.f32 %v711, 2.0
    %v716 = vmul.f32 %v715, %v714
    %v718 = vrot.slane %v711, 4
    %v720 = vmul.f32 %v72, %v718
    %v722 = vrot.slane %v720, 4
    %v724 = vadd.f32 %v700, %v722
    %v726 = vrot.slane %v716, 4
    %v728 = vmul.f32 %v74, %v726
    %v730 = vrot.slane %v728, 4
    %v732 = vadd.f32 %v724, %v730
    %v733 = vsub.f32 %v78, %v732
    %v734 = vmul.f32 %v733, 0.01
    %v735 = vadd.f32 %v734, 0.0
    %v736 = vand.u32 2147483647, %v735
    %vm737 = vcmp.le.f32.partialorder %v736, 0.7853982
    %vm738 = vcmp.lt.s32.totalorder %v735, 0
    %v739 = vand.u32 %v735, 2139095040
    %v740 = vshrl.u32 %v739, 23
    %v741 = vsub.s32 %v740, 127
    %v742 = vand.u32 2147483647, %v735
    %v743 = vand.u32 %v742, 8388607
    %v744 = vor.u32 %v743, 8388608
    %v745 = vsub.s32 0, %v744
    %v746 = vadd.s32 %v741, 1
    %vm747 = vcmp.gt.s32.totalorder %v746, 0
    %v748 = vsel %vm747, %v746, 0
    %v749 = vshrl.u32 %v748, 5
    %v750 = vand.u32 %v748, 31
    %v751 = vsub.s32 32, %v750
    %v752 = vshrl.u32 683565275, %v751
    %v753 = vshll.u32 683565275, %v750
    %v754 = vshrl.u32 2475754826, %v751
    %v755 = vor.u32 %v753, %v754
    %v756 = vshll.u32 2475754826, %v750
    %v757 = vshrl.u32 2131351028, %v751
    %v758 = vor.u32 %v756, %v757
    %v759 = vshll.u32 2131351028, %v750
    %v760 = vshrl.u32 2102212464, %v751
    %v761 = vor.u32 %v759, %v760
    %v762 = vshll.u32 2102212464, %v750
    %v763 = vshrl.u32 920167782, %v751
    %v764 = vor.u32 %v762, %v763
    %v765 = vshll.u32 920167782, %v750
    %v766 = vshrl.u32 1326507024, %v751
    %v767 = vor.u32 %v765, %v766
    %vm768 = vcmp.lt.s32.totalorder %v749, 1
    %vm769 = vcmp.lt.s32.totalorder %v749, 2
    %vm770 = vcmp.lt.s32.totalorder %v749, 3
    %vm771 = vcmp.lt.s32.totalorder %v749, 4
    %v772 = vsel %vm768, %v752, %v755
    %v773 = vsel %vm771, %v761, 2102212464
    %v774 = vsel %vm770, %v758, %v773
    %v775 = vsel %vm769, %v772, %v774
    %v776 = vsel %vm768, %v755, %v758
    %v777 = vsel %vm771, %v764, 920167782
    %v778 = vsel %vm770, %v761, %v777
    %v779 = vsel %vm769, %v776, %v778
    %v780 = vsel %vm768, %v758, %v761
    %v781 = vsel %vm771, %v767, 1326507024
    %v782 = vsel %vm770, %v764, %v781
    %v783 = vsel %vm769, %v780, %v782
    %v784 = vshll.u32 %v744, 8
    %v785 = vmul.u32.u64.compose %v784, %v783
    %v786 = vextract.low.u32 %v785
    %v787 = vextract.high.u32 %v785
    %v788 = vmul.u32.u64.compose %v784, %v779
    %v789 = vextract.low.u32 %v788
    %v790 = vextract.high.u32 %v788
    %v791 = vmul.u32 %v784, %v775
    %v792 = vadd.s32 %v787, %v789
    %vm793 = vc.u32 %v787, %v789
    %v794 = vadd.s32 %v790, 1
    %v795 = vsel %vm793, %v794, %v790
    %v796 = vadd.s32 %v791, %v795
    %v797 = vadd.s32 %v796, 536870912
    %v798 = vshrl.u32 %v797, 30
    %v799 = vshll.u32 %v798, 30
    %v800 = vsub.s32 %v796, %v799
    %vm801 = vcmp.lt.s32.totalorder %v800, 0
    %v802 = vsub.s32 0, %v800
    %v803 = vsel %vm801, %v802, %v800
    %v804 = vclz %v803
    %v805 = vsub.s32 %v804, 2
    %vm806 = vcmp.gt.s32.totalorder 0, %v805
    %v807 = vsel %vm806, 0, %v805
    %v808 = vsub.s32 32, %v807
    %v809 = vshll.u32 %v800, %v807
    %v810 = vshrl.u32 %v792, %v808
    %v811 = vor.u32 %v809, %v810
    %v812 = vsub.s32 4294967266, %v807
    %v813 = vadd.s32 %v812, 127
    %v814 = vshll.u32 %v813, 23
    %v815 = vor.u32 4788187, %v814
    %v816 = vand.u32 2147483647, %v815
    %v818 = vcvt.s32.f32 %v811
    %v819 = vmul.f32 %v818, %v816
    %v820 = vxor.u32 %v819, 2147483648
    %v821 = vsel %vm738, %v820, %v819
    %v822 = vsub.s32 4, %v798
    %v823 = vsel %vm738, %v822, %v798
    %v824 = vsel %vm737, %v735, %v821
    %v825 = vsel %vm737, 0, %v823
    %v826 = vcosq.f32.pop %v824
    %v827 = vsinq.f32.pop %v824
    %vm828 = vweird.f32 %v735
    %v829 = vadd.s32 %v825, 3
    %v830 = vand.u32 %v829, 3
    %vm831 = vcmp.lt.s32.totalorder %v830, 2
    %vm832 = vcmp.eq.s32.totalorder %v830, 0
    %v833 = vxor.u32 %v827, 2147483648
    %v834 = vsel %vm832, %v826, %v833
    %vm835 = vcmp.eq.s32.totalorder %v830, 2
    %v836 = vxor.u32 %v826, 2147483648
    %v837 = vsel %vm835, %v836, %v827
    %v838 = vsel %vm831, %v834, %v837
    %v839 = vsel %vm828, nan, %v838
    %v840 = vand.u32 2147483647, %v735
    %vm841 = vcmp.le.f32.partialorder %v840, 0.7853982
    %vm842 = vcmp.lt.s32.totalorder %v735, 0
    %v843 = vand.u32 %v735, 2139095040
    %v844 = vshrl.u32 %v843, 23
    %v845 = vsub.s32 %v844, 127
    %v846 = vand.u32 2147483647, %v735
    %v847 = vand.u32 %v846, 8388607
    %v848 = vor.u32 %v847, 8388608
    %v849 = vsub.s32 0, %v848
    %v850 = vadd.s32 %v845, 1
    %vm851 = vcmp.gt.s32.totalorder %v850, 0
    %v852 = vsel %vm851, %v850, 0
    %v853 = vshrl.u32 %v852, 5
    %v854 = vand.u32 %v852, 31
    %v855 = vsub.s32 32, %v854
    %v856 = vshrl.u32 683565275, %v855
    %v857 = vshll.u32 683565275, %v854
    %v858 = vshrl.u32 2475754826, %v855
    %v859 = vor.u32 %v857, %v858
    %v860 = vshll.u32 2475754826, %v854
    %v861 = vshrl.u32 2131351028, %v855
    %v862 = vor.u32 %v860, %v861
    %v863 = vshll.u32 2131351028, %v854
    %v864 = vshrl.u32 2102212464, %v855
    %v865 = vor.u32 %v863, %v864
    %v866 = vshll.u32 2102212464, %v854
    %v867 = vshrl.u32 920167782, %v855
    %v868 = vor.u32 %v866, %v867
    %v869 = vshll.u32 920167782, %v854
    %v870 = vshrl.u32 1326507024, %v855
    %v871 = vor.u32 %v869, %v870
    %vm872 = vcmp.lt.s32.totalorder %v853, 1
    %vm873 = vcmp.lt.s32.totalorder %v853, 2
    %vm874 = vcmp.lt.s32.totalorder %v853, 3
    %vm875 = vcmp.lt.s32.totalorder %v853, 4
    %v876 = vsel %vm872, %v856, %v859
    %v877 = vsel %vm875, %v865, 2102212464
    %v878 = vsel %vm874, %v862, %v877
    %v879 = vsel %vm873, %v876, %v878
    %v880 = vsel %vm872, %v859, %v862
    %v881 = vsel %vm875, %v868, 920167782
    %v882 = vsel %vm874, %v865, %v881
    %v883 = vsel %vm873, %v880, %v882
    %v884 = vsel %vm872, %v862, %v865
    %v885 = vsel %vm875, %v871, 1326507024
    %v886 = vsel %vm874, %v868, %v885
    %v887 = vsel %vm873, %v884, %v886
    %v888 = vshll.u32 %v848, 8
    %v889 = vmul.u32.u64.compose %v888, %v887
    %v890 = vextract.low.u32 %v889
    %v891 = vextract.high.u32 %v889
    %v892 = vmul.u32.u64.compose %v888, %v883
    %v893 = vextract.low.u32 %v892
    %v894 = vextract.high.u32 %v892
    %v895 = vmul.u32 %v888, %v879
    %v896 = vadd.s32 %v891, %v893
    %vm897 = vc.u32 %v891, %v893
    %v898 = vadd.s32 %v894, 1
    %v899 = vsel %vm897, %v898, %v894
    %v900 = vadd.s32 %v895, %v899
    %v901 = vadd.s32 %v900, 536870912
    %v902 = vshrl.u32 %v901, 30
    %v903 = vshll.u32 %v902, 30
    %v904 = vsub.s32 %v900, %v903
    %vm905 = vcmp.lt.s32.totalorder %v904, 0
    %v906 = vsub.s32 0, %v904
    %v907 = vsel %vm905, %v906, %v904
    %v908 = vclz %v907
    %v909 = vsub.s32 %v908, 2
    %vm910 = vcmp.gt.s32.totalorder 0, %v909
    %v911 = vsel %vm910, 0, %v909
    %v912 = vsub.s32 32, %v911
    %v913 = vshll.u32 %v904, %v911
    %v914 = vshrl.u32 %v896, %v912
    %v915 = vor.u32 %v913, %v914
    %v916 = vsub.s32 4294967266, %v911
    %v917 = vadd.s32 %v916, 127
    %v918 = vshll.u32 %v917, 23
    %v919 = vor.u32 4788187, %v918
    %v920 = vand.u32 2147483647, %v919
    %v922 = vcvt.s32.f32 %v915
    %v923 = vmul.f32 %v922, %v920
    %v924 = vxor.u32 %v923, 2147483648
    %v925 = vsel %vm842, %v924, %v923
    %v926 = vsub.s32 4, %v902
    %v927 = vsel %vm842, %v926, %v902
    %v928 = vsel %vm841, %v735, %v925
    %v929 = vsel %vm841, 0, %v927
    %v930 = vcosq.f32.pop %v928
    %v931 = vsinq.f32.pop %v928
    %vm932 = vweird.f32 %v735
    %v933 = vand.u32 %v929, 3
    %vm934 = vcmp.lt.s32.totalorder %v933, 2
    %vm935 = vcmp.eq.s32.totalorder %v933, 0
    %v936 = vxor.u32 %v931, 2147483648
    %v937 = vsel %vm935, %v930, %v936
    %vm938 = vcmp.eq.s32.totalorder %v933, 2
    %v939 = vxor.u32 %v930, 2147483648
    %v940 = vsel %vm938, %v939, %v931
    %v941 = vsel %vm934, %v937, %v940
    %v942 = vsel %vm932, nan, %v941
    %v943 = vlaneseq
    %v944 = vshrl.u32 %v943, 7
    %v945 = vsub.s32 0, %v944
    %v946 = vrot.slane %v942, %v945
    %v947 = vmul.f32 %v839, %v946
    %v948 = vlaneseq
    %v949 = vshrl.u32 %v948, 7
    %v950 = vsub.s32 0, %v949
    %v951 = vrot.slane %v839, %v950
    %v952 = vmul.f32 %v942, %v951
    %v953 = vsub.f32 %v947, %v952
    %v954 = vmul.f32 %v942, %v946
    %v955 = vmul.f32 %v839, %v951
    %v956 = vadd.f32 %v954, %v955
    %v957 = vmul.f32 %v953, 2.0
    %v958 = vmul.f32 %v957, %v956
    %v959 = vmul.f32 %v71, %v953
    %v960 = vadd.f32 %v959, 0.0
    %v961 = vmul.f32 %v73, %v958
    %v962 = vadd.f32 %v960, %v961
    %v963 = vlaneseq
    %v964 = vshrl.u32 %v963, 7
    %v965 = vsub.s32 1, %v964
    %v966 = vrot.slane %v942, %v965
    %v967 = vmul.f32 %v839, %v966
    %v968 = vlaneseq
    %v969 = vshrl.u32 %v968, 7
    %v970 = vsub.s32 1, %v969
    %v971 = vrot.slane %v839, %v970
    %v972 = vmul.f32 %v942, %v971
    %v973 = vsub.f32 %v967, %v972
    %v974 = vmul.f32 %v942, %v966
    %v975 = vmul.f32 %v839, %v971
    %v976 = vadd.f32 %v974, %v975
    %v977 = vmul.f32 %v973, 2.0
    %v978 = vmul.f32 %v977, %v976
    %v980 = vrot.slane %v973, 4
    %v982 = vmul.f32 %v71, %v980
    %v984 = vrot.slane %v982, 4
    %v986 = vadd.f32 %v962, %v984
    %v988 = vrot.slane %v978, 4
    %v990 = vmul.f32 %v73, %v988
    %v992 = vrot.slane %v990, 4
    %v994 = vadd.f32 %v986, %v992
    %v995 = vlaneseq
    %v996 = vshrl.u32 %v995, 7
    %v997 = vsub.s32 2, %v996
    %v998 = vrot.slane %v942, %v997
    %v999 = vmul.f32 %v839, %v998
    %v1000 = vlaneseq
    %v1001 = vshrl.u32 %v1000, 7
    %v1002 = vsub.s32 2, %v1001
    %v1003 = vrot.slane %v839, %v1002
    %v1004 = vmul.f32 %v942, %v1003
    %v1005 = vsub.f32 %v999, %v1004
    %v1006 = vmul.f32 %v942, %v998
    %v1007 = vmul.f32 %v839, %v1003
    %v1008 = vadd.f32 %v1006, %v1007
    %v1009 = vmul.f32 %v1005, 2.0
    %v1010 = vmul.f32 %v1009, %v1008
    %v1011 = vmul.f32 %v72, %v1005
    %v1012 = vadd.f32 %v994, %v1011
    %v1013 = vmul.f32 %v74, %v1010
    %v1014 = vadd.f32 %v1012, %v1013
    %v1015 = vlaneseq
    %v1016 = vshrl.u32 %v1015, 7
    %v1017 = vsub.s32 3, %v1016
    %v1018 = vrot.slane %v942, %v1017
    %v1019 = vmul.f32 %v839, %v1018
    %v1020 = vlaneseq
    %v1021 = vshrl.u32 %v1020, 7
    %v1022 = vsub.s32 3, %v1021
    %v1023 = vrot.slane %v839, %v1022
    %v1024 = vmul.f32 %v942, %v1023
    %v1025 = vsub.f32 %v1019, %v1024
    %v1026 = vmul.f32 %v942, %v1018
    %v1027 = vmul.f32 %v839, %v1023
    %v1028 = vadd.f32 %v1026, %v1027
    %v1029 = vmul.f32 %v1025, 2.0
    %v1030 = vmul.f32 %v1029, %v1028
    %v1032 = vrot.slane %v1025, 4
    %v1034 = vmul.f32 %v72, %v1032
    %v1036 = vrot.slane %v1034, 4
    %v1038 = vadd.f32 %v1014, %v1036
    %v1040 = vrot.slane %v1030, 4
    %v1042 = vmul.f32 %v74, %v1040
    %v1044 = vrot.slane %v1042, 4
    %v1046 = vadd.f32 %v1038, %v1044
    %v1047 = vsub.f32 %v78, %v1046
    %v1048 = vmul.f32 %v1047, 0.01
    %v1049 = vmul.f32 %v419, 2.0
    %v1050 = vadd.f32 %v104, %v1049
    %v1051 = vmul.f32 %v734, 2.0
    %v1052 = vadd.f32 %v1050, %v1051
    %v1053 = vadd.f32 %v1052, %v1048
    %v1054 = vmul.f32 %v1053, 0.16666667
    %v1055 = vadd.f32 %v1054, 0.0
    %v1057 = vrot.slane %v1055, 1
    %v1059 = vsub.f32 %v1055, %v1057
    %v1060 = vsub.f32 0.0, %v1059
    %v1061 = vand.u32 2147483647, %v1060
    %vm1062 = vcmp.le.f32.partialorder %v1061, 0.7853982
    %vm1063 = vcmp.lt.s32.totalorder %v1060, 0
    %v1064 = vand.u32 %v1060, 2139095040
    %v1065 = vshrl.u32 %v1064, 23
    %v1066 = vsub.s32 %v1065, 127
    %v1067 = vand.u32 2147483647, %v1060
    %v1068 = vand.u32 %v1067, 8388607
    %v1069 = vor.u32 %v1068, 8388608
    %v1070 = vsub.s32 0, %v1069
    %v1071 = vadd.s32 %v1066, 1
    %vm1072 = vcmp.gt.s32.totalorder %v1071, 0
    %v1073 = vsel %vm1072, %v1071, 0
    %v1074 = vshrl.u32 %v1073, 5
    %v1075 = vand.u32 %v1073, 31
    %v1076 = vsub.s32 32, %v1075
    %v1077 = vshrl.u32 683565275, %v1076
    %v1078 = vshll.u32 683565275, %v1075
    %v1079 = vshrl.u32 2475754826, %v1076
    %v1080 = vor.u32 %v1078, %v1079
    %v1081 = vshll.u32 2475754826, %v1075
    %v1082 = vshrl.u32 2131351028, %v1076
    %v1083 = vor.u32 %v1081, %v1082
    %v1084 = vshll.u32 2131351028, %v1075
    %v1085 = vshrl.u32 2102212464, %v1076
    %v1086 = vor.u32 %v1084, %v1085
    %v1087 = vshll.u32 2102212464, %v1075
    %v1088 = vshrl.u32 920167782, %v1076
    %v1089 = vor.u32 %v1087, %v1088
    %v1090 = vshll.u32 920167782, %v1075
    %v1091 = vshrl.u32 1326507024, %v1076
    %v1092 = vor.u32 %v1090, %v1091
    %vm1093 = vcmp.lt.s32.totalorder %v1074, 1
    %vm1094 = vcmp.lt.s32.totalorder %v1074, 2
    %vm1095 = vcmp.lt.s32.totalorder %v1074, 3
    %vm1096 = vcmp.lt.s32.totalorder %v1074, 4
    %v1097 = vsel %vm1093, %v1077, %v1080
    %v1098 = vsel %vm1096, %v1086, 2102212464
    %v1099 = vsel %vm1095, %v1083, %v1098
    %v1100 = vsel %vm1094, %v1097, %v1099
    %v1101 = vsel %vm1093, %v1080, %v1083
    %v1102 = vsel %vm1096, %v1089, 920167782
    %v1103 = vsel %vm1095, %v1086, %v1102
    %v1104 = vsel %vm1094, %v1101, %v1103
    %v1105 = vsel %vm1093, %v1083, %v1086
    %v1106 = vsel %vm1096, %v1092, 1326507024
    %v1107 = vsel %vm1095, %v1089, %v1106
    %v1108 = vsel %vm1094, %v1105, %v1107
    %v1109 = vshll.u32 %v1069, 8
    %v1110 = vmul.u32.u64.compose %v1109, %v1108
    %v1111 = vextract.low.u32 %v1110
    %v1112 = vextract.high.u32 %v1110
    %v1113 = vmul.u32.u64.compose %v1109, %v1104
    %v1114 = vextract.low.u32 %v1113
    %v1115 = vextract.high.u32 %v1113
    %v1116 = vmul.u32 %v1109, %v1100
    %v1117 = vadd.s32 %v1112, %v1114
    %vm1118 = vc.u32 %v1112, %v1114
    %v1119 = vadd.s32 %v1115, 1
    %v1120 = vsel %vm1118, %v1119, %v1115
    %v1121 = vadd.s32 %v1116, %v1120
    %v1122 = vadd.s32 %v1121, 536870912
    %v1123 = vshrl.u32 %v1122, 30
    %v1124 = vshll.u32 %v1123, 30
    %v1125 = vsub.s32 %v1121, %v1124
    %vm1126 = vcmp.lt.s32.totalorder %v1125, 0
    %v1127 = vsub.s32 0, %v1125
    %v1128 = vsel %vm1126, %v1127, %v1125
    %v1129 = vclz %v1128
    %v1130 = vsub.s32 %v1129, 2
    %vm1131 = vcmp.gt.s32.totalorder 0, %v1130
    %v1132 = vsel %vm1131, 0, %v1130
    %v1133 = vsub.s32 32, %v1132
    %v1134 = vshll.u32 %v1125, %v1132
    %v1135 = vshrl.u32 %v1117, %v1133
    %v1136 = vor.u32 %v1134, %v1135
    %v1137 = vsub.s32 4294967266, %v1132
    %v1138 = vadd.s32 %v1137, 127
    %v1139 = vshll.u32 %v1138, 23
    %v1140 = vor.u32 4788187, %v1139
    %v1141 = vand.u32 2147483647, %v1140
    %v1143 = vcvt.s32.f32 %v1136
    %v1144 = vmul.f32 %v1143, %v1141
    %v1145 = vxor.u32 %v1144, 2147483648
    %v1146 = vsel %vm1063, %v1145, %v1144
    %v1147 = vsub.s32 4, %v1123
    %v1148 = vsel %vm1063, %v1147, %v1123
    %v1149 = vsel %vm1062, %v1060, %v1146
    %v1150 = vsel %vm1062, 0, %v1148
    %v1151 = vcosq.f32.pop %v1149
    %v1152 = vsinq.f32.pop %v1149
    %vm1153 = vweird.f32 %v1060
    %v1154 = vadd.s32 %v1150, 3
    %v1155 = vand.u32 %v1154, 3
    %vm1156 = vcmp.lt.s32.totalorder %v1155, 2
    %vm1157 = vcmp.eq.s32.totalorder %v1155, 0
    %v1158 = vxor.u32 %v1152, 2147483648
    %v1159 = vsel %vm1157, %v1151, %v1158
    %vm1160 = vcmp.eq.s32.totalorder %v1155, 2
    %v1161 = vxor.u32 %v1151, 2147483648
    %v1162 = vsel %vm1160, %v1161, %v1152
    %v1163 = vsel %vm1156, %v1159, %v1162
    %v1164 = vsel %vm1153, nan, %v1163
    %v1165 = vsub.f32 1.0, %v1164
    %v1166 = vmul.f32 %v1165, 0.56418955
    %v1167 = vand.u32 2147483647, %v1059
    %vm1168 = vcmp.le.f32.partialorder %v1167, 0.7853982
    %vm1169 = vcmp.lt.s32.totalorder %v1059, 0
    %v1170 = vand.u32 %v1059, 2139095040
    %v1171 = vshrl.u32 %v1170, 23
    %v1172 = vsub.s32 %v1171, 127
    %v1173 = vand.u32 2147483647, %v1059
    %v1174 = vand.u32 %v1173, 8388607
    %v1175 = vor.u32 %v1174, 8388608
    %v1176 = vsub.s32 0, %v1175
    %v1177 = vadd.s32 %v1172, 1
    %vm1178 = vcmp.gt.s32.totalorder %v1177, 0
    %v1179 = vsel %vm1178, %v1177, 0
    %v1180 = vshrl.u32 %v1179, 5
    %v1181 = vand.u32 %v1179, 31
    %v1182 = vsub.s32 32, %v1181
    %v1183 = vshrl.u32 683565275, %v1182
    %v1184 = vshll.u32 683565275, %v1181
    %v1185 = vshrl.u32 2475754826, %v1182
    %v1186 = vor.u32 %v1184, %v1185
    %v1187 = vshll.u32 2475754826, %v1181
    %v1188 = vshrl.u32 2131351028, %v1182
    %v1189 = vor.u32 %v1187, %v1188
    %v1190 = vshll.u32 2131351028, %v1181
    %v1191 = vshrl.u32 2102212464, %v1182
    %v1192 = vor.u32 %v1190, %v1191
    %v1193 = vshll.u32 2102212464, %v1181
    %v1194 = vshrl.u32 920167782, %v1182
    %v1195 = vor.u32 %v1193, %v1194
    %v1196 = vshll.u32 920167782, %v1181
    %v1197 = vshrl.u32 1326507024, %v1182
    %v1198 = vor.u32 %v1196, %v1197
    %vm1199 = vcmp.lt.s32.totalorder %v1180, 1
    %vm1200 = vcmp.lt.s32.totalorder %v1180, 2
    %vm1201 = vcmp.lt.s32.totalorder %v1180, 3
    %vm1202 = vcmp.lt.s32.totalorder %v1180, 4
    %v1203 = vsel %vm1199, %v1183, %v1186
    %v1204 = vsel %vm1202, %v1192, 2102212464
    %v1205 = vsel %vm1201, %v1189, %v1204
    %v1206 = vsel %vm1200, %v1203, %v1205
    %v1207 = vsel %vm1199, %v1186, %v1189
    %v1208 = vsel %vm1202, %v1195, 920167782
    %v1209 = vsel %vm1201, %v1192, %v1208
    %v1210 = vsel %vm1200, %v1207, %v1209
    %v1211 = vsel %vm1199, %v1189, %v1192
    %v1212 = vsel %vm1202, %v1198, 1326507024
    %v1213 = vsel %vm1201, %v1195, %v1212
    %v1214 = vsel %vm1200, %v1211, %v1213
    %v1215 = vshll.u32 %v1175, 8
    %v1216 = vmul.u32.u64.compose %v1215, %v1214
    %v1217 = vextract.low.u32 %v1216
    %v1218 = vextract.high.u32 %v1216
    %v1219 = vmul.u32.u64.compose %v1215, %v1210
    %v1220 = vextract.low.u32 %v1219
    %v1221 = vextract.high.u32 %v1219
    %v1222 = vmul.u32 %v1215, %v1206
    %v1223 = vadd.s32 %v1218, %v1220
    %vm1224 = vc.u32 %v1218, %v1220
    %v1225 = vadd.s32 %v1221, 1
    %v1226 = vsel %vm1224, %v1225, %v1221
    %v1227 = vadd.s32 %v1222, %v1226
    %v1228 = vadd.s32 %v1227, 536870912
    %v1229 = vshrl.u32 %v1228, 30
    %v1230 = vshll.u32 %v1229, 30
    %v1231 = vsub.s32 %v1227, %v1230
    %vm1232 = vcmp.lt.s32.totalorder %v1231, 0
    %v1233 = vsub.s32 0, %v1231
    %v1234 = vsel %vm1232, %v1233, %v1231
    %v1235 = vclz %v1234
    %v1236 = vsub.s32 %v1235, 2
    %vm1237 = vcmp.gt.s32.totalorder 0, %v1236
    %v1238 = vsel %vm1237, 0, %v1236
    %v1239 = vsub.s32 32, %v1238
    %v1240 = vshll.u32 %v1231, %v1238
    %v1241 = vshrl.u32 %v1223, %v1239
    %v1242 = vor.u32 %v1240, %v1241
    %v1243 = vsub.s32 4294967266, %v1238
    %v1244 = vadd.s32 %v1243, 127
    %v1245 = vshll.u32 %v1244, 23
    %v1246 = vor.u32 4788187, %v1245
    %v1247 = vand.u32 2147483647, %v1246
    %v1249 = vcvt.s32.f32 %v1242
    %v1250 = vmul.f32 %v1249, %v1247
    %v1251 = vxor.u32 %v1250, 2147483648
    %v1252 = vsel %vm1169, %v1251, %v1250
    %v1253 = vsub.s32 4, %v1229
    %v1254 = vsel %vm1169, %v1253, %v1229
    %v1255 = vsel %vm1168, %v1059, %v1252
    %v1256 = vsel %vm1168, 0, %v1254
    %v1257 = vcosq.f32.pop %v1255
    %v1258 = vsinq.f32.pop %v1255
    %vm1259 = vweird.f32 %v1059
    %v1260 = vadd.s32 %v1256, 3
    %v1261 = vand.u32 %v1260, 3
    %vm1262 = vcmp.lt.s32.totalorder %v1261, 2
    %vm1263 = vcmp.eq.s32.totalorder %v1261, 0
    %v1264 = vxor.u32 %v1258, 2147483648
    %v1265 = vsel %vm1263, %v1257, %v1264
    %vm1266 = vcmp.eq.s32.totalorder %v1261, 2
    %v1267 = vxor.u32 %v1257, 2147483648
    %v1268 = vsel %vm1266, %v1267, %v1258
    %v1269 = vsel %vm1262, %v1265, %v1268
    %v1270 = vsel %vm1259, nan, %v1269
    %v1271 = vsub.f32 1.0, %v1270
    %v1272 = vmul.f32 %v1271, 0.56418955
    %v1273 = vsub.f32 3.1415927, %v1059
    %v1274 = vand.u32 2147483647, %v1273
    %vm1275 = vcmp.le.f32.partialorder %v1274, 0.7853982
    %vm1276 = vcmp.lt.s32.totalorder %v1273, 0
    %v1277 = vand.u32 %v1273, 2139095040
    %v1278 = vshrl.u32 %v1277, 23
    %v1279 = vsub.s32 %v1278, 127
    %v1280 = vand.u32 2147483647, %v1273
    %v1281 = vand.u32 %v1280, 8388607
    %v1282 = vor.u32 %v1281, 8388608
    %v1283 = vsub.s32 0, %v1282
    %v1284 = vadd.s32 %v1279, 1
    %vm1285 = vcmp.gt.s32.totalorder %v1284, 0
    %v1286 = vsel %vm1285, %v1284, 0
    %v1287 = vshrl.u32 %v1286, 5
    %v1288 = vand.u32 %v1286, 31
    %v1289 = vsub.s32 32, %v1288
    %v1290 = vshrl.u32 683565275, %v1289
    %v1291 = vshll.u32 683565275, %v1288
    %v1292 = vshrl.u32 2475754826, %v1289
    %v1293 = vor.u32 %v1291, %v1292
    %v1294 = vshll.u32 2475754826, %v1288
    %v1295 = vshrl.u32 2131351028, %v1289
    %v1296 = vor.u32 %v1294, %v1295
    %v1297 = vshll.u32 2131351028, %v1288
    %v1298 = vshrl.u32 2102212464, %v1289
    %v1299 = vor.u32 %v1297, %v1298
    %v1300 = vshll.u32 2102212464, %v1288
    %v1301 = vshrl.u32 920167782, %v1289
    %v1302 = vor.u32 %v1300, %v1301
    %v1303 = vshll.u32 920167782, %v1288
    %v1304 = vshrl.u32 1326507024, %v1289
    %v1305 = vor.u32 %v1303, %v1304
    %vm1306 = vcmp.lt.s32.totalorder %v1287, 1
    %vm1307 = vcmp.lt.s32.totalorder %v1287, 2
    %vm1308 = vcmp.lt.s32.totalorder %v1287, 3
    %vm1309 = vcmp.lt.s32.totalorder %v1287, 4
    %v1310 = vsel %vm1306, %v1290, %v1293
    %v1311 = vsel %vm1309, %v1299, 2102212464
    %v1312 = vsel %vm1308, %v1296, %v1311
    %v1313 = vsel %vm1307, %v1310, %v1312
    %v1314 = vsel %vm1306, %v1293, %v1296
    %v1315 = vsel %vm1309, %v1302, 920167782
    %v1316 = vsel %vm1308, %v1299, %v1315
    %v1317 = vsel %vm1307, %v1314, %v1316
    %v1318 = vsel %vm1306, %v1296, %v1299
    %v1319 = vsel %vm1309, %v1305, 1326507024
    %v1320 = vsel %vm1308, %v1302, %v1319
    %v1321 = vsel %vm1307, %v1318, %v1320
    %v1322 = vshll.u32 %v1282, 8
    %v1323 = vmul.u32.u64.compose %v1322, %v1321
    %v1324 = vextract.low.u32 %v1323
    %v1325 = vextract.high.u32 %v1323
    %v1326 = vmul.u32.u64.compose %v1322, %v1317
    %v1327 = vextract.low.u32 %v1326
    %v1328 = vextract.high.u32 %v1326
    %v1329 = vmul.u32 %v1322, %v1313
    %v1330 = vadd.s32 %v1325, %v1327
    %vm1331 = vc.u32 %v1325, %v1327
    %v1332 = vadd.s32 %v1328, 1
    %v1333 = vsel %vm1331, %v1332, %v1328
    %v1334 = vadd.s32 %v1329, %v1333
    %v1335 = vadd.s32 %v1334, 536870912
    %v1336 = vshrl.u32 %v1335, 30
    %v1337 = vshll.u32 %v1336, 30
    %v1338 = vsub.s32 %v1334, %v1337
    %vm1339 = vcmp.lt.s32.totalorder %v1338, 0
    %v1340 = vsub.s32 0, %v1338
    %v1341 = vsel %vm1339, %v1340, %v1338
    %v1342 = vclz %v1341
    %v1343 = vsub.s32 %v1342, 2
    %vm1344 = vcmp.gt.s32.totalorder 0, %v1343
    %v1345 = vsel %vm1344, 0, %v1343
    %v1346 = vsub.s32 32, %v1345
    %v1347 = vshll.u32 %v1338, %v1345
    %v1348 = vshrl.u32 %v1330, %v1346
    %v1349 = vor.u32 %v1347, %v1348
    %v1350 = vsub.s32 4294967266, %v1345
    %v1351 = vadd.s32 %v1350, 127
    %v1352 = vshll.u32 %v1351, 23
    %v1353 = vor.u32 4788187, %v1352
    %v1354 = vand.u32 2147483647, %v1353
    %v1356 = vcvt.s32.f32 %v1349
    %v1357 = vmul.f32 %v1356, %v1354
    %v1358 = vxor.u32 %v1357, 2147483648
    %v1359 = vsel %vm1276, %v1358, %v1357
    %v1360 = vsub.s32 4, %v1336
    %v1361 = vsel %vm1276, %v1360, %v1336
    %v1362 = vsel %vm1275, %v1273, %v1359
    %v1363 = vsel %vm1275, 0, %v1361
    %v1364 = vcosq.f32.pop %v1362
    %v1365 = vsinq.f32.pop %v1362
    %vm1366 = vweird.f32 %v1273
    %v1367 = vand.u32 %v1363, 3
    %vm1368 = vcmp.lt.s32.totalorder %v1367, 2
    %vm1369 = vcmp.eq.s32.totalorder %v1367, 0
    %v1370 = vxor.u32 %v1365, 2147483648
    %v1371 = vsel %vm1369, %v1364, %v1370
    %vm1372 = vcmp.eq.s32.totalorder %v1367, 2
    %v1373 = vxor.u32 %v1364, 2147483648
    %v1374 = vsel %vm1372, %v1373, %v1365
    %v1375 = vsel %vm1368, %v1371, %v1374
    %v1376 = vsel %vm1366, nan, %v1375
    %v1377 = vsub.f32 1.0, %v1376
    %v1378 = vmul.f32 %v1377, 0.56418955
    %v1379 = vmax.f32 %v1166, %v1272
    %v1380 = vmax.f32 %v1379, %v1378
    %v1381 = vsub.f32 %v1166, %v1380
    %v1382 = vmul.f32 %v1381, 1.442695
    %v1383 = vpow.pop %v1382
    %v1384 = vsub.f32 %v1272, %v1380
    %v1385 = vmul.f32 %v1384, 1.442695
    %v1386 = vpow.pop %v1385
    %v1387 = vsub.f32 %v1378, %v1380
    %v1388 = vmul.f32 %v1387, 1.442695
    %v1389 = vpow.pop %v1388
    %v1390 = vadd.f32 %v1383, %v1386
    %v1391 = vadd.f32 %v1390, %v1389
    %v1392 = vrcp.pop %v1391
    %v1393 = vmul.f32 1.0, %v1392
    %v1394 = vmul.f32 %v1383, %v1393
    %v1395 = vmul.f32 %v1386, %v1393
    %v1396 = vmul.f32 %v1389, %v1393
    %v1398 = vrot.slane %v1394, 2
    %v1401 = vrot.slane %v1395, 1
    %v1404 = vrot.slane %v1059, 7
    %vm1406 = vcmask 1040384
    %v1407 = vsel %vm1406, %v1398, %v1401
    %v1408 = vsel %vm76, %v1407, %v1396
    %vm1409 = vcmask 1042432
    %v1410 = vsel %vm1409, %v1408, %v1404
    %1411 = vst [vmem:[#allocation10] sm:$0xf] %v1410
    // Predicated region
    $region34: #{tpu_custom_call.1} parent=1 // pred_check
      _
    $region35: #{tpu_custom_call.1} parent=1 // pred_check_branch
      %1413 = sbr.rel (0) target = $region37
    $region36: #{tpu_custom_call.1} parent=1 // pred_region
      %s1415 = ssub.s32 64, 64
      %1416 = vsyncadd [#allocation4], %s1415
      %s1418 = sshll.u32 [#allocation10], 4
      %s1419 = int_to_ptr.vmem [resolvable:$true] %s1418
      %1421 = dma.vmem_to_hbm [thread:$0]  %s1419, 64, %s4, [#allocation4]
    $region37: #{tpu_custom_call.1} parent=1 // pred_fallthru
      _
    // Predicated region
    $region38: #{tpu_custom_call.1} parent=1 // pred_check
      _
    $region39: #{tpu_custom_call.1} parent=1 // pred_check_branch
      %1423 = sbr.rel (0) target = $region41
    $region40: #{tpu_custom_call.1} parent=1 // pred_region
      %1424 = dma.done [#allocation4], 64
    $region41: #{tpu_custom_call.1} parent=1 // pred_fallthru
      _
    %1425 = vsyncpa [#allocation3], 1
    %1426 = vsyncpa [#allocation6], 1
    %1427 = vsyncpa [#allocation9], 1
    %1428 = vsyncpa [#allocation4], 1

</llo_original>
